<compile_context>
chip_gen: v7x
topology: tpu7x:2x2x1
jax: 0.10.0
libtpu: 0.0.40
codegen_flags: <defaults>
</compile_context>

<pallas_src>
import functools

import jax
import jax.numpy as jnp
from jax import lax
from jax.experimental import pallas as pl
from jax.experimental.pallas import tpu as pltpu


def _leaky_relu(x, slope=0.1):
    return jnp.where(x > 0, x, slope * x)


def _resblock_repeat_kernel(x_ref, xt_ref, xb_ref, w1_ref, b1_ref, w2_ref,
                            b2_ref, o_ref, *, W, Cmid, TH, use_residual):
    """One (batch, row-tile) step of one ResidualBlock repeat.

    x_ref : (TH*W, C)  bf16   main row tile (channel-minor)
    xt_ref: (W, C)     bf16   halo row above the tile (clamped)
    xb_ref: (W, C)     bf16   halo row below the tile (clamped)
    w1_ref: (C, Cmid)  bf16   1x1 conv weight, BN1 scale folded
    b1_ref: (1, Cmid)  f32    BN1 shift
    w2_ref: (3,3,Cmid,C) bf16 3x3 conv weight (kh, kw, cin, cout), BN2 folded
    b2_ref: (1, C)     f32    BN2 shift
    o_ref : (TH*W, C)  bf16   output row tile
    """
    C = o_ref.shape[-1]
    t = pl.program_id(1)
    n_tiles = pl.num_programs(1)
    TW = TH * W
    EXT = TW + 2 * W

    w1 = w1_ref[...]                                        # (C, Cmid) bf16

    def conv1(x_bf):                                        # (rows, C) -> (rows, Cmid) f32
        y = jnp.dot(x_bf, w1, preferred_element_type=jnp.float32)
        return _leaky_relu(y + b1_ref[...])

    x_main = x_ref[...]                                     # (TW, C) bf16
    y1_main = conv1(x_main)                                 # (TW, Cmid) f32
    y1_top = conv1(xt_ref[...])                             # (W, Cmid)
    y1_bot = conv1(xb_ref[...])                             # (W, Cmid)

    # 3x3 SAME padding in H: halo rows outside the image contribute zeros
    # (the halo BlockSpecs clamp, so just zero them when out of image).
    y1_top = y1_top * (t > 0).astype(jnp.float32)
    y1_bot = y1_bot * (t < n_tiles - 1).astype(jnp.float32)

    # Extended row window, flattened row-major / channel-minor: (EXT, Cmid).
    # All piece boundaries are multiples of 8 sublanes (W % 8 == 0).
    e = jnp.concatenate([y1_top, y1_main, y1_bot], axis=0)  # (EXT, Cmid) f32

    # Width-shifted copies with zeros at the left/right image borders
    # (implements the 3x3 SAME padding in W).  Built once in f32, then cast;
    # the per-tap matmul LHS below are 8-aligned row slices of these.
    col = lax.broadcasted_iota(jnp.int32, (EXT, 1), 0) % W
    zrow = jnp.zeros((1, Cmid), jnp.float32)
    e_l = jnp.where(col != 0, jnp.concatenate([zrow, e[:-1, :]], axis=0), 0.0)
    e_r = jnp.where(col != W - 1, jnp.concatenate([e[1:, :], zrow], axis=0), 0.0)

    e = e.astype(jnp.bfloat16)
    e_l = e_l.astype(jnp.bfloat16)
    e_r = e_r.astype(jnp.bfloat16)
    shifted = (e_l, e, e_r)                                 # indexed by kw

    # ---- 3x3 conv as 9 accumulated matmuls (no im2col buffer) ----
    acc = jnp.zeros((TW, C), jnp.float32)
    for dh in range(3):
        for dw in range(3):
            lhs = shifted[dw][dh * W: dh * W + TW, :]       # (TW, Cmid) bf16
            acc = acc + jnp.dot(lhs, w2_ref[dh, dw],
                                preferred_element_type=jnp.float32)

    y2 = _leaky_relu(acc + b2_ref[...])
    if use_residual:
        y2 = y2 + x_main.astype(jnp.float32)
    o_ref[...] = y2.astype(o_ref.dtype)


def _vmem_capacity_bytes():
    try:
        return int(pltpu.get_tpu_info().vmem_capacity_bytes)
    except Exception:
        return 128 * 2 ** 20


def _choose_row_tile(H, W, C, vmem_cap):
    """Largest row tile dividing H that fits a conservative VMEM budget."""
    cands = [th for th in (256, 128, 64, 32, 16, 8) if th < H and H % th == 0]
    if not cands:
        return H
    Cmid = max(C // 2, 1)
    for th in cands:
        approx = 4 * th * W * C * 2 + 12 * (th + 2) * W * Cmid * 4
        if approx <= vmem_cap // 4:
            return th
    return cands[-1]


def residual_block_repeat(x_flat, kparams, *, H, W, C, use_residual,
                          row_tile, vmem_cap):
    """One repeat. x_flat: (N, H*W, C) bfloat16 (channel-minor layout)."""
    N = x_flat.shape[0]
    w1, b1, w2, b2 = kparams                   # w1/w2 bf16, b1/b2 f32
    Cmid = w1.shape[1]
    TH = row_tile
    n_tiles = H // TH

    kernel = functools.partial(_resblock_repeat_kernel, W=W, Cmid=Cmid, TH=TH,
                               use_residual=use_residual)

    # Generation-aware VMEM limit from the actual per-step buffer budget.
    bf16, f32 = 2, 4
    blk = TH * W * C * bf16
    budget = (2 * 2 * blk                                     # in/out blocks, 2x buffered
              + 4 * W * C * bf16                              # halo blocks
              + 2 * ((C * Cmid + 9 * Cmid * C) * bf16 + (Cmid + C) * f32)
              + (TH + 2) * W * Cmid * (3 * f32 + 3 * bf16)    # e / e_l / e_r
              + 2 * TH * W * C * f32)                         # acc / y2
    vmem_limit = int(min(max(2 * budget, 16 * 2 ** 20), int(0.7 * vmem_cap)))

    flops = 2 * N * H * W * (C * Cmid + 9 * Cmid * C)
    bytes_accessed = int(2 * N * H * W * C * bf16
                         + (C * Cmid + 9 * Cmid * C) * bf16 + (Cmid + C) * f32)

    return pl.pallas_call(
        kernel,
        out_shape=jax.ShapeDtypeStruct((N, H * W, C), jnp.bfloat16),
        grid_spec=pltpu.PrefetchScalarGridSpec(
            num_scalar_prefetch=0,
            grid=(N, n_tiles),
            in_specs=[
                # Main row tile + two clamped 1-row halo blocks.
                pl.BlockSpec((None, TH * W, C), lambda n, t: (n, t, 0)),
                pl.BlockSpec((None, W, C),
                             lambda n, t: (n, jnp.maximum(t * TH - 1, 0), 0)),
                pl.BlockSpec((None, W, C),
                             lambda n, t: (n, jnp.minimum(t * TH + TH, H - 1), 0)),
                pl.BlockSpec((C, Cmid), lambda n, t: (0, 0)),
                pl.BlockSpec((1, Cmid), lambda n, t: (0, 0)),
                pl.BlockSpec((3, 3, Cmid, C), lambda n, t: (0, 0, 0, 0)),
                pl.BlockSpec((1, C), lambda n, t: (0, 0)),
            ],
            out_specs=pl.BlockSpec((None, TH * W, C), lambda n, t: (n, t, 0)),
        ),
        compiler_params=pltpu.CompilerParams(
            dimension_semantics=("parallel", "parallel"),
            vmem_limit_bytes=vmem_limit),
        cost_estimate=pl.CostEstimate(flops=flops, transcendentals=0,
                                      bytes_accessed=bytes_accessed),
    )(x_flat, x_flat, x_flat, w1, b1, w2, b2)


def residual_block_forward(x_nchw, all_params, *, use_residual, num_repeats):
    """Full ResidualBlock forward. x_nchw: (N, C, H, W) like PyTorch."""
    N, C, H, W = x_nchw.shape
    # NCHW -> (N, H*W, C) channel-minor, bf16 inter-repeat activations.
    x = jnp.transpose(x_nchw, (0, 2, 3, 1)).reshape(N, H * W, C)
    x = x.astype(jnp.bfloat16)
    vmem_cap = _vmem_capacity_bytes()
    row_tile = _choose_row_tile(H, W, C, vmem_cap)
    for r in range(num_repeats):
        w1f, b1, w2f, b2 = all_params[r]
        kparams = (w1f.astype(jnp.bfloat16), b1,
                   w2f.astype(jnp.bfloat16), b2)       # pre-cast weights once
        x = residual_block_repeat(x, kparams, H=H, W=W, C=C,
                                  use_residual=use_residual,
                                  row_tile=row_tile, vmem_cap=vmem_cap)
    x = x.astype(jnp.float32).reshape(N, H, W, C)
    return jnp.transpose(x, (0, 3, 1, 2))              # NHWC -> NCHW


# ---------------- parameter construction (deterministic) ----------------

def _fold_bn(gamma, beta, mean, var, eps=1e-5):
    scale = gamma / jnp.sqrt(var + eps)
    shift = beta - mean * scale
    return scale, shift


def _rand_bn(key, n):
    k1, k2, k3, k4 = jax.random.split(key, 4)
    gamma = 1.0 + 0.1 * jax.random.normal(k1, (n,), jnp.float32)
    beta = 0.1 * jax.random.normal(k2, (n,), jnp.float32)
    mean = 0.05 * jax.random.normal(k3, (n,), jnp.float32)
    var = 1.0 + 0.1 * jnp.abs(jax.random.normal(k4, (n,), jnp.float32))
    return gamma, beta, mean, var


def make_params(key, channels, num_repeats):
    """Per repeat: (w1_folded (C,Cmid), bn1_shift (1,Cmid),
                    w2_folded (3,3,Cmid,C), bn2_shift (1,C)) -- all f32."""
    Cmid = channels // 2
    params = []
    for _ in range(num_repeats):
        key, kw1, kw2, kb1, kb2 = jax.random.split(key, 5)
        # conv1: 1x1, torch (Cmid, C, 1, 1) -> (C, Cmid) here.
        w1 = jax.random.normal(kw1, (channels, Cmid), jnp.float32) * 0.1
        # conv2: 3x3, torch (C, Cmid, 3, 3) -> (3, 3, Cmid, C) (HWIO) here.
        w2 = jax.random.normal(kw2, (3, 3, Cmid, channels), jnp.float32) * 0.1
        s1, sh1 = _fold_bn(*_rand_bn(kb1, Cmid))
        s2, sh2 = _fold_bn(*_rand_bn(kb2, channels))
        w1f = w1 * s1[None, :]
        w2f = w2 * s2[None, None, None, :]
        params.append((w1f, sh1.reshape(1, -1), w2f, sh2.reshape(1, -1)))
    return params


# ---------------- pure-JAX reference (for verification) ----------------

def _ref_forward(x_nchw, all_params, *, use_residual, num_repeats):
    x = jnp.transpose(x_nchw, (0, 2, 3, 1)).astype(jnp.float32)    # NHWC
    dn = ("NHWC", "HWIO", "NHWC")
    for r in range(num_repeats):
        w1f, b1, w2f, b2 = all_params[r]
        C, Cmid = w1f.shape
        y = lax.conv_general_dilated(x, w1f.reshape(1, 1, C, Cmid), (1, 1),
                                     "VALID", dimension_numbers=dn)
        y = _leaky_relu(y + b1.reshape(1, 1, 1, -1))
        y = lax.conv_general_dilated(y, w2f, (1, 1), "SAME",
                                     dimension_numbers=dn)
        y = _leaky_relu(y + b2.reshape(1, 1, 1, -1))
        x = y + x if use_residual else y
    return jnp.transpose(x, (0, 3, 1, 2))


if __name__ == "__main__":
    key = jax.random.PRNGKey(0)
    k_x, k_p = jax.random.split(key)

    N, C, H, W = 2, 8, 16, 16        # W % 8 == 0, H // row_tile == 2 tiles
    num_repeats = 2
    use_residual = True

    x = jax.random.normal(k_x, (N, C, H, W), jnp.float32)
    params = make_params(k_p, C, num_repeats)

    out = jax.block_until_ready(
        residual_block_forward(x, params, use_residual=use_residual,
                               num_repeats=num_repeats))
    ref = jax.block_until_ready(
        _ref_forward(x, params, use_residual=use_residual,
                     num_repeats=num_repeats))

    assert out.shape == (N, C, H, W)
    err = float(jnp.max(jnp.abs(out - ref)))
    # bf16 MXU operands + bf16 inter-repeat activations vs f32 reference.
    assert jnp.allclose(out, ref, atol=5e-2, rtol=5e-2), f"max abs err {err}"
    print("KERNEL_OK")
</pallas_src>

<mosaic_0001>
module attributes {stable_mosaic.version = 11 : i64} {
  func.func @_resblock_repeat_kernel(%arg0: i32, %arg1: i32, %arg2: memref<1x128x8xbf16, #tpu.memory_space<vmem>>, %arg3: memref<1x16x8xbf16, #tpu.memory_space<vmem>>, %arg4: memref<1x16x8xbf16, #tpu.memory_space<vmem>>, %arg5: memref<8x4xbf16, #tpu.memory_space<vmem>>, %arg6: memref<1x4xf32, #tpu.memory_space<vmem>>, %arg7: memref<3x3x4x8xbf16, #tpu.memory_space<vmem>>, %arg8: memref<1x8xf32, #tpu.memory_space<vmem>>, %arg9: memref<1x128x8xbf16, #tpu.memory_space<vmem>>) attributes {dimension_semantics = [#tpu.dimension_semantics<parallel>, #tpu.dimension_semantics<parallel>], iteration_bounds = array<i64: 2, 2>, scalar_prefetch = 0 : i64, scratch_operands = 0 : i64, tpu.core_type = #tpu.core_type<tc>, window_params = [{transform_indices = @transform_0, window_bounds = array<i64: 1, 128, 8>}, {transform_indices = @transform_1, window_bounds = array<i64: 1, 16, 8>}, {transform_indices = @transform_2, window_bounds = array<i64: 1, 16, 8>}, {pipeline_mode = #tpu.pipeline_mode<synchronous>, transform_indices = @transform_3, window_bounds = array<i64: 8, 4>}, {pipeline_mode = #tpu.pipeline_mode<synchronous>, transform_indices = @transform_4, window_bounds = array<i64: 1, 4>}, {pipeline_mode = #tpu.pipeline_mode<synchronous>, transform_indices = @transform_5, window_bounds = array<i64: 3, 3, 4, 8>}, {pipeline_mode = #tpu.pipeline_mode<synchronous>, transform_indices = @transform_6, window_bounds = array<i64: 1, 8>}, {transform_indices = @transform_7, window_bounds = array<i64: 1, 128, 8>}]} {
    %c0 = arith.constant 0 : index
    %c0_0 = arith.constant 0 : index
    %0 = vector.load %arg5[%c0, %c0_0] : memref<8x4xbf16, #tpu.memory_space<vmem>>, vector<8x4xbf16>
    %c0_1 = arith.constant 0 : index
    %c0_2 = arith.constant 0 : index
    %c0_3 = arith.constant 0 : index
    %1 = vector.load %arg2[%c0_1, %c0_2, %c0_3] : memref<1x128x8xbf16, #tpu.memory_space<vmem>>, vector<1x128x8xbf16>
    %2 = vector.shape_cast %1 : vector<1x128x8xbf16> to vector<128x8xbf16>
    %cst = arith.constant dense<0.000000e+00> : vector<128x4xf32>
    %3 = tpu.matmul %2, %0, %cst {dimension_numbers = #tpu.dot_dimension_numbers<[1], [0], [0], [1], [0, 0, 1, 1], [], []>} : vector<128x8xbf16>, vector<8x4xbf16>, vector<128x4xf32> -> vector<128x4xf32>
    %c0_4 = arith.constant 0 : index
    %c0_5 = arith.constant 0 : index
    %4 = vector.load %arg6[%c0_4, %c0_5] : memref<1x4xf32, #tpu.memory_space<vmem>>, vector<1x4xf32>
    %5 = vector.broadcast %4 : vector<1x4xf32> to vector<128x4xf32>
    %6 = arith.addf %3, %5 : vector<128x4xf32>
    %cst_6 = arith.constant 0.000000e+00 : f32
    %7 = vector.broadcast %cst_6 : f32 to vector<128x4xf32>
    %8 = arith.cmpf ogt, %6, %7 : vector<128x4xf32>
    %cst_7 = arith.constant 1.000000e-01 : f32
    %9 = vector.broadcast %cst_7 : f32 to vector<128x4xf32>
    %10 = arith.mulf %9, %6 : vector<128x4xf32>
    %11 = arith.select %8, %6, %10 : vector<128x4xi1>, vector<128x4xf32>
    %c0_8 = arith.constant 0 : index
    %c0_9 = arith.constant 0 : index
    %c0_10 = arith.constant 0 : index
    %12 = vector.load %arg3[%c0_8, %c0_9, %c0_10] : memref<1x16x8xbf16, #tpu.memory_space<vmem>>, vector<1x16x8xbf16>
    %13 = vector.shape_cast %12 : vector<1x16x8xbf16> to vector<16x8xbf16>
    %cst_11 = arith.constant dense<0.000000e+00> : vector<16x4xf32>
    %14 = tpu.matmul %13, %0, %cst_11 {dimension_numbers = #tpu.dot_dimension_numbers<[1], [0], [0], [1], [0, 0, 1, 1], [], []>} : vector<16x8xbf16>, vector<8x4xbf16>, vector<16x4xf32> -> vector<16x4xf32>
    %c0_12 = arith.constant 0 : index
    %c0_13 = arith.constant 0 : index
    %15 = vector.load %arg6[%c0_12, %c0_13] : memref<1x4xf32, #tpu.memory_space<vmem>>, vector<1x4xf32>
    %16 = vector.broadcast %15 : vector<1x4xf32> to vector<16x4xf32>
    %17 = arith.addf %14, %16 : vector<16x4xf32>
    %cst_14 = arith.constant 0.000000e+00 : f32
    %18 = vector.broadcast %cst_14 : f32 to vector<16x4xf32>
    %19 = arith.cmpf ogt, %17, %18 : vector<16x4xf32>
    %cst_15 = arith.constant 1.000000e-01 : f32
    %20 = vector.broadcast %cst_15 : f32 to vector<16x4xf32>
    %21 = arith.mulf %20, %17 : vector<16x4xf32>
    %22 = arith.select %19, %17, %21 : vector<16x4xi1>, vector<16x4xf32>
    %c0_16 = arith.constant 0 : index
    %c0_17 = arith.constant 0 : index
    %c0_18 = arith.constant 0 : index
    %23 = vector.load %arg4[%c0_16, %c0_17, %c0_18] : memref<1x16x8xbf16, #tpu.memory_space<vmem>>, vector<1x16x8xbf16>
    %24 = vector.shape_cast %23 : vector<1x16x8xbf16> to vector<16x8xbf16>
    %cst_19 = arith.constant dense<0.000000e+00> : vector<16x4xf32>
    %25 = tpu.matmul %24, %0, %cst_19 {dimension_numbers = #tpu.dot_dimension_numbers<[1], [0], [0], [1], [0, 0, 1, 1], [], []>} : vector<16x8xbf16>, vector<8x4xbf16>, vector<16x4xf32> -> vector<16x4xf32>
    %c0_20 = arith.constant 0 : index
    %c0_21 = arith.constant 0 : index
    %26 = vector.load %arg6[%c0_20, %c0_21] : memref<1x4xf32, #tpu.memory_space<vmem>>, vector<1x4xf32>
    %27 = vector.broadcast %26 : vector<1x4xf32> to vector<16x4xf32>
    %28 = arith.addf %25, %27 : vector<16x4xf32>
    %cst_22 = arith.constant 0.000000e+00 : f32
    %29 = vector.broadcast %cst_22 : f32 to vector<16x4xf32>
    %30 = arith.cmpf ogt, %28, %29 : vector<16x4xf32>
    %cst_23 = arith.constant 1.000000e-01 : f32
    %31 = vector.broadcast %cst_23 : f32 to vector<16x4xf32>
    %32 = arith.mulf %31, %28 : vector<16x4xf32>
    %33 = arith.select %30, %28, %32 : vector<16x4xi1>, vector<16x4xf32>
    %c0_i32 = arith.constant 0 : i32
    %34 = arith.cmpi sgt, %arg1, %c0_i32 : i32
    %35 = arith.extui %34 : i1 to i32
    %36 = arith.sitofp %35 : i32 to f32
    %37 = vector.broadcast %36 : f32 to vector<16x4xf32>
    %38 = arith.mulf %22, %37 : vector<16x4xf32>
    %c1_i32 = arith.constant 1 : i32
    %39 = arith.cmpi slt, %arg1, %c1_i32 : i32
    %40 = arith.extui %39 : i1 to i32
    %41 = arith.sitofp %40 : i32 to f32
    %42 = vector.broadcast %41 : f32 to vector<16x4xf32>
    %43 = arith.mulf %33, %42 : vector<16x4xf32>
    %44 = tpu.concatenate %38, %11, %43 in 0 : vector<16x4xf32>, vector<128x4xf32>, vector<16x4xf32> -> vector<160x4xf32>
    %45 = tpu.iota {dimensions = array<i32: 0>} : vector<160x1xi32>
    %c16_i32 = arith.constant 16 : i32
    %c0_i32_24 = arith.constant 0 : i32
    %46 = arith.cmpi eq, %c16_i32, %c0_i32_24 : i32
    %c1_i32_25 = arith.constant 1 : i32
    %47 = arith.select %46, %c1_i32_25, %c16_i32 : i32
    %48 = vector.broadcast %47 : i32 to vector<160x1xi32>
    %49 = arith.remsi %45, %48 : vector<160x1xi32>
    %c0_i32_26 = arith.constant 0 : i32
    %50 = vector.broadcast %c0_i32_26 : i32 to vector<160x1xi32>
    %51 = arith.cmpi ne, %49, %50 : vector<160x1xi32>
    %c0_i32_27 = arith.constant 0 : i32
    %52 = vector.broadcast %c0_i32_27 : i32 to vector<160x1xi32>
    %53 = arith.cmpi slt, %49, %52 : vector<160x1xi32>
    %c0_i32_28 = arith.constant 0 : i32
    %54 = arith.cmpi slt, %47, %c0_i32_28 : i32
    %55 = vector.broadcast %54 : i1 to vector<160x1xi1>
    %56 = vector.broadcast %55 : vector<160x1xi1> to vector<160x1xi1>
    %57 = arith.xori %53, %56 : vector<160x1xi1>
    %58 = arith.andi %57, %51 : vector<160x1xi1>
    %59 = vector.broadcast %47 : i32 to vector<160x1xi32>
    %60 = arith.addi %49, %59 : vector<160x1xi32>
    %61 = arith.select %58, %60, %49 : vector<160x1xi1>, vector<160x1xi32>
    %cst_29 = arith.constant 0.000000e+00 : f32
    %62 = vector.broadcast %cst_29 : f32 to vector<1x4xf32>
    %c0_i32_30 = arith.constant 0 : i32
    %63 = vector.broadcast %c0_i32_30 : i32 to vector<160x1xi32>
    %64 = arith.cmpi ne, %61, %63 : vector<160x1xi32>
    %65 = vector.extract_strided_slice %44 {offsets = [0, 0], sizes = [159, 4], strides = [1, 1]} : vector<160x4xf32> to vector<159x4xf32>
    %66 = tpu.concatenate %62, %65 in 0 : vector<1x4xf32>, vector<159x4xf32> -> vector<160x4xf32>
    %cst_31 = arith.constant 0.000000e+00 : f32
    %67 = vector.shape_cast %64 : vector<160x1xi1> to vector<160x1xi1>
    %68 = vector.broadcast %67 : vector<160x1xi1> to vector<160x4xi1>
    %69 = vector.broadcast %cst_31 : f32 to vector<160x4xf32>
    %70 = arith.select %68, %66, %69 : vector<160x4xi1>, vector<160x4xf32>
    %c15_i32 = arith.constant 15 : i32
    %71 = vector.broadcast %c15_i32 : i32 to vector<160x1xi32>
    %72 = arith.cmpi ne, %61, %71 : vector<160x1xi32>
    %73 = vector.extract_strided_slice %44 {offsets = [1, 0], sizes = [159, 4], strides = [1, 1]} : vector<160x4xf32> to vector<159x4xf32>
    %74 = tpu.concatenate %73, %62 in 0 : vector<159x4xf32>, vector<1x4xf32> -> vector<160x4xf32>
    %cst_32 = arith.constant 0.000000e+00 : f32
    %75 = vector.shape_cast %72 : vector<160x1xi1> to vector<160x1xi1>
    %76 = vector.broadcast %75 : vector<160x1xi1> to vector<160x4xi1>
    %77 = vector.broadcast %cst_32 : f32 to vector<160x4xf32>
    %78 = arith.select %76, %74, %77 : vector<160x4xi1>, vector<160x4xf32>
    %79 = arith.truncf %44 : vector<160x4xf32> to vector<160x4xbf16>
    %80 = arith.truncf %70 : vector<160x4xf32> to vector<160x4xbf16>
    %81 = arith.truncf %78 : vector<160x4xf32> to vector<160x4xbf16>
    %cst_33 = arith.constant 0.000000e+00 : f32
    %82 = vector.broadcast %cst_33 : f32 to vector<128x8xf32>
    %83 = vector.extract_strided_slice %80 {offsets = [0, 0], sizes = [128, 4], strides = [1, 1]} : vector<160x4xbf16> to vector<128x4xbf16>
    %c0_34 = arith.constant 0 : index
    %c0_35 = arith.constant 0 : index
    %c0_36 = arith.constant 0 : index
    %c0_37 = arith.constant 0 : index
    %84 = vector.load %arg7[%c0_34, %c0_35, %c0_36, %c0_37] : memref<3x3x4x8xbf16, #tpu.memory_space<vmem>>, vector<1x1x4x8xbf16>
    %85 = vector.shape_cast %84 : vector<1x1x4x8xbf16> to vector<4x8xbf16>
    %cst_38 = arith.constant dense<0.000000e+00> : vector<128x8xf32>
    %86 = tpu.matmul %83, %85, %cst_38 {dimension_numbers = #tpu.dot_dimension_numbers<[1], [0], [0], [1], [0, 0, 1, 1], [], []>} : vector<128x4xbf16>, vector<4x8xbf16>, vector<128x8xf32> -> vector<128x8xf32>
    %87 = arith.addf %82, %86 : vector<128x8xf32>
    %88 = vector.extract_strided_slice %79 {offsets = [0, 0], sizes = [128, 4], strides = [1, 1]} : vector<160x4xbf16> to vector<128x4xbf16>
    %c0_39 = arith.constant 0 : index
    %c1 = arith.constant 1 : index
    %c0_40 = arith.constant 0 : index
    %c0_41 = arith.constant 0 : index
    %89 = vector.load %arg7[%c0_39, %c1, %c0_40, %c0_41] : memref<3x3x4x8xbf16, #tpu.memory_space<vmem>>, vector<1x1x4x8xbf16>
    %90 = vector.shape_cast %89 : vector<1x1x4x8xbf16> to vector<4x8xbf16>
    %cst_42 = arith.constant dense<0.000000e+00> : vector<128x8xf32>
    %91 = tpu.matmul %88, %90, %cst_42 {dimension_numbers = #tpu.dot_dimension_numbers<[1], [0], [0], [1], [0, 0, 1, 1], [], []>} : vector<128x4xbf16>, vector<4x8xbf16>, vector<128x8xf32> -> vector<128x8xf32>
    %92 = arith.addf %87, %91 : vector<128x8xf32>
    %93 = vector.extract_strided_slice %81 {offsets = [0, 0], sizes = [128, 4], strides = [1, 1]} : vector<160x4xbf16> to vector<128x4xbf16>
    %c0_43 = arith.constant 0 : index
    %c2 = arith.constant 2 : index
    %c0_44 = arith.constant 0 : index
    %c0_45 = arith.constant 0 : index
    %94 = vector.load %arg7[%c0_43, %c2, %c0_44, %c0_45] : memref<3x3x4x8xbf16, #tpu.memory_space<vmem>>, vector<1x1x4x8xbf16>
    %95 = vector.shape_cast %94 : vector<1x1x4x8xbf16> to vector<4x8xbf16>
    %cst_46 = arith.constant dense<0.000000e+00> : vector<128x8xf32>
    %96 = tpu.matmul %93, %95, %cst_46 {dimension_numbers = #tpu.dot_dimension_numbers<[1], [0], [0], [1], [0, 0, 1, 1], [], []>} : vector<128x4xbf16>, vector<4x8xbf16>, vector<128x8xf32> -> vector<128x8xf32>
    %97 = arith.addf %92, %96 : vector<128x8xf32>
    %98 = vector.extract_strided_slice %80 {offsets = [16, 0], sizes = [128, 4], strides = [1, 1]} : vector<160x4xbf16> to vector<128x4xbf16>
    %c1_47 = arith.constant 1 : index
    %c0_48 = arith.constant 0 : index
    %c0_49 = arith.constant 0 : index
    %c0_50 = arith.constant 0 : index
    %99 = vector.load %arg7[%c1_47, %c0_48, %c0_49, %c0_50] : memref<3x3x4x8xbf16, #tpu.memory_space<vmem>>, vector<1x1x4x8xbf16>
    %100 = vector.shape_cast %99 : vector<1x1x4x8xbf16> to vector<4x8xbf16>
    %cst_51 = arith.constant dense<0.000000e+00> : vector<128x8xf32>
    %101 = tpu.matmul %98, %100, %cst_51 {dimension_numbers = #tpu.dot_dimension_numbers<[1], [0], [0], [1], [0, 0, 1, 1], [], []>} : vector<128x4xbf16>, vector<4x8xbf16>, vector<128x8xf32> -> vector<128x8xf32>
    %102 = arith.addf %97, %101 : vector<128x8xf32>
    %103 = vector.extract_strided_slice %79 {offsets = [16, 0], sizes = [128, 4], strides = [1, 1]} : vector<160x4xbf16> to vector<128x4xbf16>
    %c1_52 = arith.constant 1 : index
    %c1_53 = arith.constant 1 : index
    %c0_54 = arith.constant 0 : index
    %c0_55 = arith.constant 0 : index
    %104 = vector.load %arg7[%c1_52, %c1_53, %c0_54, %c0_55] : memref<3x3x4x8xbf16, #tpu.memory_space<vmem>>, vector<1x1x4x8xbf16>
    %105 = vector.shape_cast %104 : vector<1x1x4x8xbf16> to vector<4x8xbf16>
    %cst_56 = arith.constant dense<0.000000e+00> : vector<128x8xf32>
    %106 = tpu.matmul %103, %105, %cst_56 {dimension_numbers = #tpu.dot_dimension_numbers<[1], [0], [0], [1], [0, 0, 1, 1], [], []>} : vector<128x4xbf16>, vector<4x8xbf16>, vector<128x8xf32> -> vector<128x8xf32>
    %107 = arith.addf %102, %106 : vector<128x8xf32>
    %108 = vector.extract_strided_slice %81 {offsets = [16, 0], sizes = [128, 4], strides = [1, 1]} : vector<160x4xbf16> to vector<128x4xbf16>
    %c1_57 = arith.constant 1 : index
    %c2_58 = arith.constant 2 : index
    %c0_59 = arith.constant 0 : index
    %c0_60 = arith.constant 0 : index
    %109 = vector.load %arg7[%c1_57, %c2_58, %c0_59, %c0_60] : memref<3x3x4x8xbf16, #tpu.memory_space<vmem>>, vector<1x1x4x8xbf16>
    %110 = vector.shape_cast %109 : vector<1x1x4x8xbf16> to vector<4x8xbf16>
    %cst_61 = arith.constant dense<0.000000e+00> : vector<128x8xf32>
    %111 = tpu.matmul %108, %110, %cst_61 {dimension_numbers = #tpu.dot_dimension_numbers<[1], [0], [0], [1], [0, 0, 1, 1], [], []>} : vector<128x4xbf16>, vector<4x8xbf16>, vector<128x8xf32> -> vector<128x8xf32>
    %112 = arith.addf %107, %111 : vector<128x8xf32>
    %113 = vector.extract_strided_slice %80 {offsets = [32, 0], sizes = [128, 4], strides = [1, 1]} : vector<160x4xbf16> to vector<128x4xbf16>
    %c2_62 = arith.constant 2 : index
    %c0_63 = arith.constant 0 : index
    %c0_64 = arith.constant 0 : index
    %c0_65 = arith.constant 0 : index
    %114 = vector.load %arg7[%c2_62, %c0_63, %c0_64, %c0_65] : memref<3x3x4x8xbf16, #tpu.memory_space<vmem>>, vector<1x1x4x8xbf16>
    %115 = vector.shape_cast %114 : vector<1x1x4x8xbf16> to vector<4x8xbf16>
    %cst_66 = arith.constant dense<0.000000e+00> : vector<128x8xf32>
    %116 = tpu.matmul %113, %115, %cst_66 {dimension_numbers = #tpu.dot_dimension_numbers<[1], [0], [0], [1], [0, 0, 1, 1], [], []>} : vector<128x4xbf16>, vector<4x8xbf16>, vector<128x8xf32> -> vector<128x8xf32>
    %117 = arith.addf %112, %116 : vector<128x8xf32>
    %118 = vector.extract_strided_slice %79 {offsets = [32, 0], sizes = [128, 4], strides = [1, 1]} : vector<160x4xbf16> to vector<128x4xbf16>
    %c2_67 = arith.constant 2 : index
    %c1_68 = arith.constant 1 : index
    %c0_69 = arith.constant 0 : index
    %c0_70 = arith.constant 0 : index
    %119 = vector.load %arg7[%c2_67, %c1_68, %c0_69, %c0_70] : memref<3x3x4x8xbf16, #tpu.memory_space<vmem>>, vector<1x1x4x8xbf16>
    %120 = vector.shape_cast %119 : vector<1x1x4x8xbf16> to vector<4x8xbf16>
    %cst_71 = arith.constant dense<0.000000e+00> : vector<128x8xf32>
    %121 = tpu.matmul %118, %120, %cst_71 {dimension_numbers = #tpu.dot_dimension_numbers<[1], [0], [0], [1], [0, 0, 1, 1], [], []>} : vector<128x4xbf16>, vector<4x8xbf16>, vector<128x8xf32> -> vector<128x8xf32>
    %122 = arith.addf %117, %121 : vector<128x8xf32>
    %123 = vector.extract_strided_slice %81 {offsets = [32, 0], sizes = [128, 4], strides = [1, 1]} : vector<160x4xbf16> to vector<128x4xbf16>
    %c2_72 = arith.constant 2 : index
    %c2_73 = arith.constant 2 : index
    %c0_74 = arith.constant 0 : index
    %c0_75 = arith.constant 0 : index
    %124 = vector.load %arg7[%c2_72, %c2_73, %c0_74, %c0_75] : memref<3x3x4x8xbf16, #tpu.memory_space<vmem>>, vector<1x1x4x8xbf16>
    %125 = vector.shape_cast %124 : vector<1x1x4x8xbf16> to vector<4x8xbf16>
    %cst_76 = arith.constant dense<0.000000e+00> : vector<128x8xf32>
    %126 = tpu.matmul %123, %125, %cst_76 {dimension_numbers = #tpu.dot_dimension_numbers<[1], [0], [0], [1], [0, 0, 1, 1], [], []>} : vector<128x4xbf16>, vector<4x8xbf16>, vector<128x8xf32> -> vector<128x8xf32>
    %127 = arith.addf %122, %126 : vector<128x8xf32>
    %c0_77 = arith.constant 0 : index
    %c0_78 = arith.constant 0 : index
    %128 = vector.load %arg8[%c0_77, %c0_78] : memref<1x8xf32, #tpu.memory_space<vmem>>, vector<1x8xf32>
    %129 = vector.broadcast %128 : vector<1x8xf32> to vector<128x8xf32>
    %130 = arith.addf %127, %129 : vector<128x8xf32>
    %cst_79 = arith.constant 0.000000e+00 : f32
    %131 = vector.broadcast %cst_79 : f32 to vector<128x8xf32>
    %132 = arith.cmpf ogt, %130, %131 : vector<128x8xf32>
    %cst_80 = arith.constant 1.000000e-01 : f32
    %133 = vector.broadcast %cst_80 : f32 to vector<128x8xf32>
    %134 = arith.mulf %133, %130 : vector<128x8xf32>
    %135 = arith.select %132, %130, %134 : vector<128x8xi1>, vector<128x8xf32>
    %136 = arith.extf %2 : vector<128x8xbf16> to vector<128x8xf32>
    %137 = arith.addf %135, %136 : vector<128x8xf32>
    %138 = arith.truncf %137 : vector<128x8xf32> to vector<128x8xbf16>
    %c0_81 = arith.constant 0 : index
    %c0_82 = arith.constant 0 : index
    %c0_83 = arith.constant 0 : index
    %139 = vector.load %arg9[%c0_81, %c0_82, %c0_83] : memref<1x128x8xbf16, #tpu.memory_space<vmem>>, vector<1x128x8xbf16>
    %140 = vector.shape_cast %139 : vector<1x128x8xbf16> to vector<128x8xbf16>
    %141 = vector.shape_cast %138 : vector<128x8xbf16> to vector<1x128x8xbf16>
    tpu.vector_store %arg9[%c0_81, %c0_82, %c0_83], %141 {strides = array<i32>} : memref<1x128x8xbf16, #tpu.memory_space<vmem>>, vector<1x128x8xbf16>,
    return
  }
  func.func @transform_0(%arg0: i32, %arg1: i32) -> (i32, i32, i32) {
    %c0_i32 = arith.constant 0 : i32
    %c0_i32_0 = arith.constant 0 : i32
    return %arg0, %arg1, %c0_i32 : i32, i32, i32
  }
  func.func @transform_1(%arg0: i32, %arg1: i32) -> (i32, i32, i32) {
    %c8_i32 = arith.constant 8 : i32
    %0 = arith.muli %arg1, %c8_i32 : i32
    %c1_i32 = arith.constant 1 : i32
    %1 = arith.subi %0, %c1_i32 : i32
    %c0_i32 = arith.constant 0 : i32
    %2 = arith.maxsi %1, %c0_i32 : i32
    %c0_i32_0 = arith.constant 0 : i32
    %c0_i32_1 = arith.constant 0 : i32
    return %arg0, %2, %c0_i32_0 : i32, i32, i32
  }
  func.func @transform_2(%arg0: i32, %arg1: i32) -> (i32, i32, i32) {
    %c8_i32 = arith.constant 8 : i32
    %0 = arith.muli %arg1, %c8_i32 : i32
    %c8_i32_0 = arith.constant 8 : i32
    %1 = arith.addi %0, %c8_i32_0 : i32
    %c15_i32 = arith.constant 15 : i32
    %2 = arith.minsi %1, %c15_i32 : i32
    %c0_i32 = arith.constant 0 : i32
    %c0_i32_1 = arith.constant 0 : i32
    return %arg0, %2, %c0_i32 : i32, i32, i32
  }
  func.func @transform_3(%arg0: i32, %arg1: i32) -> (i32, i32) {
    %c0_i32 = arith.constant 0 : i32
    %c0_i32_0 = arith.constant 0 : i32
    %c0_i32_1 = arith.constant 0 : i32
    return %c0_i32, %c0_i32_0 : i32, i32
  }
  func.func @transform_4(%arg0: i32, %arg1: i32) -> (i32, i32) {
    %c0_i32 = arith.constant 0 : i32
    %c0_i32_0 = arith.constant 0 : i32
    %c0_i32_1 = arith.constant 0 : i32
    return %c0_i32, %c0_i32_0 : i32, i32
  }
  func.func @transform_5(%arg0: i32, %arg1: i32) -> (i32, i32, i32, i32) {
    %c0_i32 = arith.constant 0 : i32
    %c0_i32_0 = arith.constant 0 : i32
    %c0_i32_1 = arith.constant 0 : i32
    %c0_i32_2 = arith.constant 0 : i32
    %c0_i32_3 = arith.constant 0 : i32
    return %c0_i32, %c0_i32_0, %c0_i32_1, %c0_i32_2 : i32, i32, i32, i32
  }
  func.func @transform_6(%arg0: i32, %arg1: i32) -> (i32, i32) {
    %c0_i32 = arith.constant 0 : i32
    %c0_i32_0 = arith.constant 0 : i32
    %c0_i32_1 = arith.constant 0 : i32
    return %c0_i32, %c0_i32_0 : i32, i32
  }
  func.func @transform_7(%arg0: i32, %arg1: i32) -> (i32, i32, i32) {
    %c0_i32 = arith.constant 0 : i32
    %c0_i32_0 = arith.constant 0 : i32
    return %arg0, %arg1, %c0_i32 : i32, i32, i32
  }
}

</mosaic_0001>

<llo_original>
// kernel: tpu_custom_call.1
$region0: #{tpu_custom_call.1}
  #allocation0 [shape = 'u32[]', space=smem, size = 0x4, offset = 0x4, fixed_abs, tag = 'smem constant byte address 0x4 - core index']
  #allocation1 [shape = 'u32[144,128]{1,0:T(1,128)}', space=vmem, size = 0x12000, scoped, tag = 'internal scratch']
  %s0 = inlined_call_operand.vmem [shape: bf16[2,256,8], index: 0, kind: input, shape index: {}]
  %s1 = inlined_call_operand.vmem [shape: bf16[2,256,8], index: 1, kind: input, shape index: {}]
  %s2 = inlined_call_operand.vmem [shape: bf16[2,256,8], index: 2, kind: input, shape index: {}]
  %s3 = inlined_call_operand.vmem [shape: bf16[8,4], index: 3, kind: input, shape index: {}]
  %s4 = inlined_call_operand.vmem [shape: f32[1,4], index: 4, kind: input, shape index: {}]
  %s5 = inlined_call_operand.vmem [shape: bf16[3,3,4,8], index: 5, kind: input, shape index: {}]
  %s6 = inlined_call_operand.vmem [shape: f32[1,8], index: 6, kind: input, shape index: {}]
  %s7 = inlined_call_operand.vmem [shape: bf16[2,256,8], index: 7, kind: output, shape index: {}]
  %s8 = sld [smem:[#allocation0]]
  $region61: #{tpu_custom_call.1} parent=0
    _
  %s10 = ssub.s32 1, %s8
  %s11 = scalar_select 0, %s10, %s8
  loop: start=0, step=1, limit=6
  $region2: #{tpu_custom_call.1} parent=0 // loop_pre_header
    _
  $region3: #{tpu_custom_call.1} parent=0 // loop_header
    %s13 = sphi 0, %s17
    %p14 = scmp.ge.s32.totalorder %s13, 6
    %s20 = sphi 0, %s32
    %s21 = sphi 0, %s28
    %s22 = sphi 0, %s20
    %s23 = sphi 0, %s21
    %s24 = sphi 0, %s22
    %s25 = sphi 0, %s23
    %s37 = sphi 0, %s39
    %s40 = sphi 0, %s37
    %s41 = sphi 0, %s40
    %s57 = sphi 0, %s41
    %s73 = sphi 0, %s75
    %s76 = sphi 0, %s73
    %s77 = sphi 0, %s76
    %s93 = sphi 0, %s77
    %s109 = sphi 0, %s111
    %s112 = sphi 0, %s109
    %s113 = sphi 0, %s112
    %s129 = sphi 0, %s113
    %s133 = sphi 0, %s133
    %s135 = sphi 0, %s133
    %s136 = sphi 0, %s135
    %s150 = sphi 0, %s136
    %s154 = sphi 0, %s154
    %s156 = sphi 0, %s154
    %s157 = sphi 0, %s156
    %s171 = sphi 0, %s157
    %s175 = sphi 0, %s175
    %s177 = sphi 0, %s175
    %s178 = sphi 0, %s177
    %s192 = sphi 0, %s178
    %s196 = sphi 0, %s196
    %s198 = sphi 0, %s196
    %s199 = sphi 0, %s198
    %s213 = sphi 0, %s199
    %s221 = sphi 0, %s223
    %s224 = sphi 0, %s221
    %s225 = sphi 0, %s224
    %s241 = sphi 0, %s225
  $region4: #{tpu_custom_call.1} parent=0 // loop_header_branch
    %16 = sbr.rel (%p14) target = $region8
  $region5: #{tpu_custom_call.1} parent=0 // loop_body
    %s18 = ssub.s32 %s13, 1
    %s19 = ssub.s32 %s13, 2
    %s26 = sadd.s32 1, %s21
    %p27 = scmp.ge.s32.totalorder %s26, 2
    %s28 = scalar_select %p27, 0, %s26
    %s29 = sadd.s32 1, %s20
    %s30 = scalar_select %p27, %s29, %s20
    %p31 = scmp.ge.s32.totalorder %s30, 2
    %s32 = scalar_select %p31, 0, %s30
    %s33 = ssub.s32 %s20, %s32
    %s34 = ssub.s32 %s21, %s28
    %s35 = sor.u32 %s33, %s34
    %p36 = scmp.eq.s32.totalorder %s35, 0
    %s38 = sadd.s32 %s37, 1
    %s39 = scalar_select %p36, %s37, %s38
    %p42 = pneg %p36
    %p43 = scmp.eq.s32.totalorder %s13, 3
    %p44 = por %p42, %p43
    %p45 = scmp.ne.s32.totalorder %s37, %s40
    %p46 = scmp.eq.s32.totalorder %s13, 0
    %p47 = por %p45, %p46
    %p48 = scmp.ne.s32.totalorder %s37, %s40
    %p49 = scmp.eq.s32.totalorder %s18, 3
    %p50 = por %p48, %p49
    %p51 = scmp.ne.s32.totalorder %s40, %s41
    %p52 = scmp.eq.s32.totalorder %s18, 0
    %p53 = por %p51, %p52
    %p54 = scmp.ne.s32.totalorder %s40, %s41
    %p55 = scmp.eq.s32.totalorder %s19, 3
    %p56 = por %p54, %p55
    %p58 = scmp.ne.s32.totalorder %s41, %s57
    %p59 = scmp.eq.s32.totalorder %s19, 0
    %p60 = por %p58, %p59
    %s61 = smul.u32 %s21, 8
    %s62 = ssub.s32 %s61, 1
    %p63 = scmp.gt.s32.totalorder %s62, 0
    %s64 = scalar_select %p63, %s62, 0
    %s65 = smul.u32 %s28, 8
    %s66 = ssub.s32 %s65, 1
    %p67 = scmp.gt.s32.totalorder %s66, 0
    %s68 = scalar_select %p67, %s66, 0
    %s69 = ssub.s32 %s20, %s32
    %s70 = ssub.s32 %s64, %s68
    %s71 = sor.u32 %s69, %s70
    %p72 = scmp.eq.s32.totalorder %s71, 0
    %s74 = sadd.s32 %s73, 1
    %s75 = scalar_select %p72, %s73, %s74
    %p78 = pneg %p72
    %p79 = scmp.eq.s32.totalorder %s13, 3
    %p80 = por %p78, %p79
    %p81 = scmp.ne.s32.totalorder %s73, %s76
    %p82 = scmp.eq.s32.totalorder %s13, 0
    %p83 = por %p81, %p82
    %p84 = scmp.ne.s32.totalorder %s73, %s76
    %p85 = scmp.eq.s32.totalorder %s18, 3
    %p86 = por %p84, %p85
    %p87 = scmp.ne.s32.totalorder %s76, %s77
    %p88 = scmp.eq.s32.totalorder %s18, 0
    %p89 = por %p87, %p88
    %p90 = scmp.ne.s32.totalorder %s76, %s77
    %p91 = scmp.eq.s32.totalorder %s19, 3
    %p92 = por %p90, %p91
    %p94 = scmp.ne.s32.totalorder %s77, %s93
    %p95 = scmp.eq.s32.totalorder %s19, 0
    %p96 = por %p94, %p95
    %s97 = smul.u32 %s21, 8
    %s98 = sadd.s32 %s97, 8
    %p99 = scmp.lt.s32.totalorder %s98, 15
    %s100 = scalar_select %p99, %s98, 15
    %s101 = smul.u32 %s28, 8
    %s102 = sadd.s32 %s101, 8
    %p103 = scmp.lt.s32.totalorder %s102, 15
    %s104 = scalar_select %p103, %s102, 15
    %s105 = ssub.s32 %s20, %s32
    %s106 = ssub.s32 %s100, %s104
    %s107 = sor.u32 %s105, %s106
    %p108 = scmp.eq.s32.totalorder %s107, 0
    %s110 = sadd.s32 %s109, 1
    %s111 = scalar_select %p108, %s109, %s110
    %p114 = pneg %p108
    %p115 = scmp.eq.s32.totalorder %s13, 3
    %p116 = por %p114, %p115
    %p117 = scmp.ne.s32.totalorder %s109, %s112
    %p118 = scmp.eq.s32.totalorder %s13, 0
    %p119 = por %p117, %p118
    %p120 = scmp.ne.s32.totalorder %s109, %s112
    %p121 = scmp.eq.s32.totalorder %s18, 3
    %p122 = por %p120, %p121
    %p123 = scmp.ne.s32.totalorder %s112, %s113
    %p124 = scmp.eq.s32.totalorder %s18, 0
    %p125 = por %p123, %p124
    %p126 = scmp.ne.s32.totalorder %s112, %s113
    %p127 = scmp.eq.s32.totalorder %s19, 3
    %p128 = por %p126, %p127
    %p130 = scmp.ne.s32.totalorder %s113, %s129
    %p131 = scmp.eq.s32.totalorder %s19, 0
    %p132 = por %p130, %p131
    %s134 = sadd.s32 %s133, 1
    %p137 = scmp.eq.s32.totalorder %s13, 3
    %p138 = scmp.ne.s32.totalorder %s133, %s135
    %p139 = scmp.eq.s32.totalorder %s13, 0
    %p140 = por %p138, %p139
    %p141 = scmp.ne.s32.totalorder %s133, %s135
    %p142 = scmp.eq.s32.totalorder %s18, 3
    %p143 = por %p141, %p142
    %p144 = scmp.ne.s32.totalorder %s135, %s136
    %p145 = scmp.eq.s32.totalorder %s18, 0
    %p146 = por %p144, %p145
    %p147 = scmp.ne.s32.totalorder %s135, %s136
    %p148 = scmp.eq.s32.totalorder %s19, 3
    %p149 = por %p147, %p148
    %p151 = scmp.ne.s32.totalorder %s136, %s150
    %p152 = scmp.eq.s32.totalorder %s19, 0
    %p153 = por %p151, %p152
    %s155 = sadd.s32 %s154, 1
    %p158 = scmp.eq.s32.totalorder %s13, 3
    %p159 = scmp.ne.s32.totalorder %s154, %s156
    %p160 = scmp.eq.s32.totalorder %s13, 0
    %p161 = por %p159, %p160
    %p162 = scmp.ne.s32.totalorder %s154, %s156
    %p163 = scmp.eq.s32.totalorder %s18, 3
    %p164 = por %p162, %p163
    %p165 = scmp.ne.s32.totalorder %s156, %s157
    %p166 = scmp.eq.s32.totalorder %s18, 0
    %p167 = por %p165, %p166
    %p168 = scmp.ne.s32.totalorder %s156, %s157
    %p169 = scmp.eq.s32.totalorder %s19, 3
    %p170 = por %p168, %p169
    %p172 = scmp.ne.s32.totalorder %s157, %s171
    %p173 = scmp.eq.s32.totalorder %s19, 0
    %p174 = por %p172, %p173
    %s176 = sadd.s32 %s175, 1
    %p179 = scmp.eq.s32.totalorder %s13, 3
    %p180 = scmp.ne.s32.totalorder %s175, %s177
    %p181 = scmp.eq.s32.totalorder %s13, 0
    %p182 = por %p180, %p181
    %p183 = scmp.ne.s32.totalorder %s175, %s177
    %p184 = scmp.eq.s32.totalorder %s18, 3
    %p185 = por %p183, %p184
    %p186 = scmp.ne.s32.totalorder %s177, %s178
    %p187 = scmp.eq.s32.totalorder %s18, 0
    %p188 = por %p186, %p187
    %p189 = scmp.ne.s32.totalorder %s177, %s178
    %p190 = scmp.eq.s32.totalorder %s19, 3
    %p191 = por %p189, %p190
    %p193 = scmp.ne.s32.totalorder %s178, %s192
    %p194 = scmp.eq.s32.totalorder %s19, 0
    %p195 = por %p193, %p194
    %s197 = sadd.s32 %s196, 1
    %p200 = scmp.eq.s32.totalorder %s13, 3
    %p201 = scmp.ne.s32.totalorder %s196, %s198
    %p202 = scmp.eq.s32.totalorder %s13, 0
    %p203 = por %p201, %p202
    %p204 = scmp.ne.s32.totalorder %s196, %s198
    %p205 = scmp.eq.s32.totalorder %s18, 3
    %p206 = por %p204, %p205
    %p207 = scmp.ne.s32.totalorder %s198, %s199
    %p208 = scmp.eq.s32.totalorder %s18, 0
    %p209 = por %p207, %p208
    %p210 = scmp.ne.s32.totalorder %s198, %s199
    %p211 = scmp.eq.s32.totalorder %s19, 3
    %p212 = por %p210, %p211
    %p214 = scmp.ne.s32.totalorder %s199, %s213
    %p215 = scmp.eq.s32.totalorder %s19, 0
    %p216 = por %p214, %p215
    %s217 = ssub.s32 %s20, %s32
    %s218 = ssub.s32 %s21, %s28
    %s219 = sor.u32 %s217, %s218
    %p220 = scmp.eq.s32.totalorder %s219, 0
    %s222 = sadd.s32 %s221, 1
    %s223 = scalar_select %p220, %s221, %s222
    %p226 = pneg %p220
    %p227 = scmp.eq.s32.totalorder %s13, 3
    %p228 = por %p226, %p227
    %p229 = scmp.ne.s32.totalorder %s221, %s224
    %p230 = scmp.eq.s32.totalorder %s13, 0
    %p231 = por %p229, %p230
    %p232 = scmp.ne.s32.totalorder %s221, %s224
    %p233 = scmp.eq.s32.totalorder %s18, 3
    %p234 = por %p232, %p233
    %p235 = scmp.ne.s32.totalorder %s224, %s225
    %p236 = scmp.eq.s32.totalorder %s18, 0
    %p237 = por %p235, %p236
    %p238 = scmp.ne.s32.totalorder %s224, %s225
    %p239 = scmp.eq.s32.totalorder %s19, 3
    %p240 = por %p238, %p239
    %p242 = scmp.ne.s32.totalorder %s225, %s241
    %p243 = scmp.eq.s32.totalorder %s19, 0
    %p244 = por %p242, %p243
    %p245 = scmp.le.s32.totalorder 1, %s13
    %p246 = scmp.lt.s32.totalorder %s13, 5
    %p247 = pnand %p245, %p246
    %p248 = pneg %p247
    // Predicated region
    $region9: #{tpu_custom_call.1} parent=5 // pred_check
      _
    $region10: #{tpu_custom_call.1} parent=5 // pred_check_branch
      %250 = sbr.rel (%p247) target = $region12
    $region11: #{tpu_custom_call.1} parent=5 // pred_region
      %s251 = ssub.s32 %s13, 1
      // Predicated region
      $region13: #{tpu_custom_call.1} parent=11 // pred_check
        %p252 = pneg %p146
      $region14: #{tpu_custom_call.1} parent=11 // pred_check_branch
        %254 = sbr.rel (%p252) target = $region16
      $region15: #{tpu_custom_call.1} parent=11 // pred_region
        _
      $region16: #{tpu_custom_call.1} parent=11 // pred_fallthru
        _
      // Predicated region
      $region17: #{tpu_custom_call.1} parent=11 // pred_check
        %p255 = pneg %p167
      $region18: #{tpu_custom_call.1} parent=11 // pred_check_branch
        %257 = sbr.rel (%p255) target = $region20
      $region19: #{tpu_custom_call.1} parent=11 // pred_region
        _
      $region20: #{tpu_custom_call.1} parent=11 // pred_fallthru
        _
      // Predicated region
      $region21: #{tpu_custom_call.1} parent=11 // pred_check
        %p258 = pneg %p188
      $region22: #{tpu_custom_call.1} parent=11 // pred_check_branch
        %260 = sbr.rel (%p258) target = $region24
      $region23: #{tpu_custom_call.1} parent=11 // pred_region
        _
      $region24: #{tpu_custom_call.1} parent=11 // pred_fallthru
        _
      // Predicated region
      $region25: #{tpu_custom_call.1} parent=11 // pred_check
        %p261 = pneg %p209
      $region26: #{tpu_custom_call.1} parent=11 // pred_check_branch
        %263 = sbr.rel (%p261) target = $region28
      $region27: #{tpu_custom_call.1} parent=11 // pred_region
        _
      $region28: #{tpu_custom_call.1} parent=11 // pred_fallthru
        _
    $region12: #{tpu_custom_call.1} parent=5 // pred_fallthru
      _
    %p264 = scmp.lt.s32.totalorder %s13, 4
    // Predicated region
    $region29: #{tpu_custom_call.1} parent=5 // pred_check
      %p265 = pneg %p264
    $region30: #{tpu_custom_call.1} parent=5 // pred_check_branch
      %267 = sbr.rel (%p265) target = $region32
    $region31: #{tpu_custom_call.1} parent=5 // pred_region
      // Predicated region
      $region33: #{tpu_custom_call.1} parent=31 // pred_check
        %p268 = pneg %p47
      $region34: #{tpu_custom_call.1} parent=31 // pred_check_branch
        %270 = sbr.rel (%p268) target = $region36
      $region35: #{tpu_custom_call.1} parent=31 // pred_region
        %s271 = smul.u32 16, %s21
        %p272 = scmp.lt.s32.totalorder %s20, 1
        %s273 = scalar_select %p272, %s20, 1
        %p274 = scmp.lt.s32.totalorder %s271, 31
        %s275 = scalar_select %p274, %s271, 31
        %s276 = smul.addr %s273, 32
        %s277 = sadd.s32 %s275, %s276
        %s278 = smul.addr %s277, 4
        %s279 = scalar_lea.vmem %s0, %s278
        %s280 = smul.u32 16, %s21
      $region36: #{tpu_custom_call.1} parent=31 // pred_fallthru
        _
      // Predicated region
      $region37: #{tpu_custom_call.1} parent=31 // pred_check
        %p281 = pneg %p83
      $region38: #{tpu_custom_call.1} parent=31 // pred_check_branch
        %283 = sbr.rel (%p281) target = $region40
      $region39: #{tpu_custom_call.1} parent=31 // pred_region
        %s284 = smul.u32 %s21, 8
        %s285 = ssub.s32 %s284, 1
        %p286 = scmp.gt.s32.totalorder %s285, 0
        %s287 = scalar_select %p286, %s285, 0
        %s288 = smul.u32 2, %s287
        %p289 = scmp.lt.s32.totalorder %s20, 1
        %s290 = scalar_select %p289, %s20, 1
        %p291 = scmp.lt.s32.totalorder %s288, 31
        %s292 = scalar_select %p291, %s288, 31
        %s293 = smul.addr %s290, 32
        %s294 = sadd.s32 %s292, %s293
        %s295 = smul.addr %s294, 4
        %s296 = scalar_lea.vmem %s1, %s295
        %s297 = smul.u32 %s21, 8
        %s298 = ssub.s32 %s297, 1
        %p299 = scmp.gt.s32.totalorder %s298, 0
        %s300 = scalar_select %p299, %s298, 0
        %s301 = smul.u32 2, %s300
      $region40: #{tpu_custom_call.1} parent=31 // pred_fallthru
        _
      // Predicated region
      $region41: #{tpu_custom_call.1} parent=31 // pred_check
        %p302 = pneg %p119
      $region42: #{tpu_custom_call.1} parent=31 // pred_check_branch
        %304 = sbr.rel (%p302) target = $region44
      $region43: #{tpu_custom_call.1} parent=31 // pred_region
        %s305 = smul.u32 %s21, 8
        %s306 = sadd.s32 %s305, 8
        %p307 = scmp.lt.s32.totalorder %s306, 15
        %s308 = scalar_select %p307, %s306, 15
        %s309 = smul.u32 2, %s308
        %p310 = scmp.lt.s32.totalorder %s20, 1
        %s311 = scalar_select %p310, %s20, 1
        %p312 = scmp.lt.s32.totalorder %s309, 31
        %s313 = scalar_select %p312, %s309, 31
        %s314 = smul.addr %s311, 32
        %s315 = sadd.s32 %s313, %s314
        %s316 = smul.addr %s315, 4
        %s317 = scalar_lea.vmem %s2, %s316
        %s318 = smul.u32 %s21, 8
        %s319 = sadd.s32 %s318, 8
        %p320 = scmp.lt.s32.totalorder %s319, 15
        %s321 = scalar_select %p320, %s319, 15
        %s322 = smul.u32 2, %s321
      $region44: #{tpu_custom_call.1} parent=31 // pred_fallthru
        _
    $region32: #{tpu_custom_call.1} parent=5 // pred_fallthru
      _
    %p323 = scmp.le.s32.totalorder 1, %s13
    %p324 = scmp.lt.s32.totalorder %s13, 5
    %p325 = pnand %p323, %p324
    %p326 = pneg %p325
    // Predicated region
    $region45: #{tpu_custom_call.1} parent=5 // pred_check
      _
    $region46: #{tpu_custom_call.1} parent=5 // pred_check_branch
      %328 = sbr.rel (%p325) target = $region48
    $region47: #{tpu_custom_call.1} parent=5 // pred_region
      %s329 = ssub.s32 %s13, 1
      %s330 = smul.u32 16, %s23
      %p331 = scmp.lt.s32.totalorder %s22, 1
      %s332 = scalar_select %p331, %s22, 1
      %p333 = scmp.lt.s32.totalorder %s330, 31
      %s334 = scalar_select %p333, %s330, 31
      %s335 = smul.addr %s332, 32
      %s336 = sadd.s32 %s334, %s335
      %s337 = smul.addr %s336, 4
      %s338 = scalar_lea.vmem %s0, %s337
      %p339 = pneg %p53
      %p340 = pneg %p50
      %s341 = smul.u32 %s23, 8
      %s342 = ssub.s32 %s341, 1
      %p343 = scmp.gt.s32.totalorder %s342, 0
      %s344 = scalar_select %p343, %s342, 0
      %s345 = smul.u32 2, %s344
      %p346 = scmp.lt.s32.totalorder %s22, 1
      %s347 = scalar_select %p346, %s22, 1
      %p348 = scmp.lt.s32.totalorder %s345, 31
      %s349 = scalar_select %p348, %s345, 31
      %s350 = smul.addr %s347, 32
      %s351 = sadd.s32 %s349, %s350
      %s352 = smul.addr %s351, 4
      %s353 = scalar_lea.vmem %s1, %s352
      %p354 = pneg %p89
      %p355 = pneg %p86
      %s356 = smul.u32 %s23, 8
      %s357 = sadd.s32 %s356, 8
      %p358 = scmp.lt.s32.totalorder %s357, 15
      %s359 = scalar_select %p358, %s357, 15
      %s360 = smul.u32 2, %s359
      %p361 = scmp.lt.s32.totalorder %s22, 1
      %s362 = scalar_select %p361, %s22, 1
      %p363 = scmp.lt.s32.totalorder %s360, 31
      %s364 = scalar_select %p363, %s360, 31
      %s365 = smul.addr %s362, 32
      %s366 = sadd.s32 %s364, %s365
      %s367 = smul.addr %s366, 4
      %s368 = scalar_lea.vmem %s2, %s367
      %p369 = pneg %p125
      %p370 = pneg %p122
      %p371 = pneg %p146
      %p372 = pneg %p143
      %p373 = pneg %p167
      %p374 = pneg %p164
      %p375 = pneg %p188
      %p376 = pneg %p185
      %p377 = pneg %p209
      %p378 = pneg %p206
      %p379 = pneg %p237
      %p380 = pneg %p234
      %s381 = smul.u32 16, %s23
      %p382 = scmp.lt.s32.totalorder %s22, 1
      %s383 = scalar_select %p382, %s22, 1
      %p384 = scmp.lt.s32.totalorder %s381, 31
      %s385 = scalar_select %p384, %s381, 31
      %s386 = smul.addr %s383, 32
      %s387 = sadd.s32 %s385, %s386
      %s388 = smul.addr %s387, 4
      %s389 = scalar_lea.vmem %s7, %s388
      %s390 = smul.u32 16, %s23
      %p391 = scmp.lt.s32.totalorder %s22, 1
      %s392 = scalar_select %p391, %s22, 1
      %p393 = scmp.lt.s32.totalorder %s390, 31
      %s394 = scalar_select %p393, %s390, 31
      %s395 = smul.addr %s392, 32
      %s396 = sadd.s32 %s394, %s395
      %s397 = smul.addr %s396, 4
      %s398 = scalar_lea.vmem %s0, %s397
      %s399 = smul.u32 16, %s23
      %s400 = smul.u32 %s23, 8
      %s401 = ssub.s32 %s400, 1
      %p402 = scmp.gt.s32.totalorder %s401, 0
      %s403 = scalar_select %p402, %s401, 0
      %s404 = smul.u32 2, %s403
      %p405 = scmp.lt.s32.totalorder %s22, 1
      %s406 = scalar_select %p405, %s22, 1
      %p407 = scmp.lt.s32.totalorder %s404, 31
      %s408 = scalar_select %p407, %s404, 31
      %s409 = smul.addr %s406, 32
      %s410 = sadd.s32 %s408, %s409
      %s411 = smul.addr %s410, 4
      %s412 = scalar_lea.vmem %s1, %s411
      %s413 = smul.u32 %s23, 8
      %s414 = ssub.s32 %s413, 1
      %p415 = scmp.gt.s32.totalorder %s414, 0
      %s416 = scalar_select %p415, %s414, 0
      %s417 = smul.u32 2, %s416
      %s418 = smul.u32 %s23, 8
      %s419 = sadd.s32 %s418, 8
      %p420 = scmp.lt.s32.totalorder %s419, 15
      %s421 = scalar_select %p420, %s419, 15
      %s422 = smul.u32 2, %s421
      %p423 = scmp.lt.s32.totalorder %s22, 1
      %s424 = scalar_select %p423, %s22, 1
      %p425 = scmp.lt.s32.totalorder %s422, 31
      %s426 = scalar_select %p425, %s422, 31
      %s427 = smul.addr %s424, 32
      %s428 = sadd.s32 %s426, %s427
      %s429 = smul.addr %s428, 4
      %s430 = scalar_lea.vmem %s2, %s429
      %s431 = smul.u32 %s23, 8
      %s432 = sadd.s32 %s431, 8
      %p433 = scmp.lt.s32.totalorder %s432, 15
      %s434 = scalar_select %p433, %s432, 15
      %s435 = smul.u32 2, %s434
      %s436 = smul.u32 16, %s23
      %p437 = scmp.lt.s32.totalorder %s22, 1
      %s438 = scalar_select %p437, %s22, 1
      %p439 = scmp.lt.s32.totalorder %s436, 31
      %s440 = scalar_select %p439, %s436, 31
      %s441 = smul.addr %s438, 32
      %s442 = sadd.s32 %s440, %s441
      %s443 = smul.addr %s442, 4
      %s444 = scalar_lea.vmem %s7, %s443
      %s445 = smul.u32 16, %s23
      %v447 = vld [vmem:[%s3] sm:$0xf]
      %v448 = vld [vmem:[%s398] sm:$0xf]
      %v449 = vld [vmem:[%s398 + $0x4] sm:$0xf]
      %v450 = vld [vmem:[%s398 + $0x8] sm:$0xf]
      %v451 = vld [vmem:[%s398 + $0xc] sm:$0xf]
      %v452 = vld [vmem:[%s398 + $0x10] sm:$0xf]
      %v453 = vld [vmem:[%s398 + $0x14] sm:$0xf]
      %v454 = vld [vmem:[%s398 + $0x18] sm:$0xf]
      %v455 = vld [vmem:[%s398 + $0x1c] sm:$0xf]
      %v456 = vld [vmem:[%s398 + $0x20] sm:$0xf]
      %v457 = vld [vmem:[%s398 + $0x24] sm:$0xf]
      %v458 = vld [vmem:[%s398 + $0x28] sm:$0xf]
      %v459 = vld [vmem:[%s398 + $0x2c] sm:$0xf]
      %v460 = vld [vmem:[%s398 + $0x30] sm:$0xf]
      %v461 = vld [vmem:[%s398 + $0x34] sm:$0xf]
      %v462 = vld [vmem:[%s398 + $0x38] sm:$0xf]
      %v463 = vld [vmem:[%s398 + $0x3c] sm:$0xf]
      %v464 = vld [vmem:[%s4] sm:$0x1]
      %v466 = vlaneseq
      %v467 = vshrl.u32 %v466, 7
      %v468 = vsub.s32 0, %v467
      %v469 = vrot.slane %v464, %v468
      %v487 = vunpack.c.l.b16 %v448
      %v488 = vunpack.c.l.b16 %v449
      %v489 = vunpack.c.l.b16 %v450
      %v490 = vunpack.c.l.b16 %v451
      %v491 = vunpack.c.l.b16 %v452
      %v492 = vunpack.c.l.b16 %v453
      %v493 = vunpack.c.l.b16 %v454
      %v494 = vunpack.c.l.b16 %v455
      %v495 = vunpack.c.l.b16 %v456
      %v496 = vunpack.c.l.b16 %v457
      %v497 = vunpack.c.l.b16 %v458
      %v498 = vunpack.c.l.b16 %v459
      %v499 = vunpack.c.l.b16 %v460
      %v500 = vunpack.c.l.b16 %v461
      %v501 = vunpack.c.l.b16 %v462
      %v502 = vunpack.c.l.b16 %v463
      %v503 = vpack.c.b16 %v488, %v487
      %v504 = vpack.c.b16 %v490, %v489
      %v505 = vpack.c.b16 %v492, %v491
      %v506 = vpack.c.b16 %v494, %v493
      %v507 = vpack.c.b16 %v496, %v495
      %v508 = vpack.c.b16 %v498, %v497
      %v509 = vpack.c.b16 %v500, %v499
      %v510 = vpack.c.b16 %v502, %v501
      %vm511 = vcmask 64512
      %v513 = vsel %vm511, %v503, 0
      %v516 = vsel %vm511, %v504, 0
      %v519 = vsel %vm511, %v505, 0
      %v522 = vsel %vm511, %v506, 0
      %v525 = vsel %vm511, %v507, 0
      %v528 = vsel %vm511, %v508, 0
      %v531 = vsel %vm511, %v509, 0
      %v534 = vsel %vm511, %v510, 0
      %vm536 = vcmask 1043456
      %v538 = vsel %vm536, %v447, 0
      %540 = vmatprep.subr.bf16.mxu0 0
      %541 = vmatpush1.bf16.msra.mxu0 %v538
      %542 = vmatprep.subr.bf16.mxu0 0
      %543 = vmatpush1.bf16.msra.mxu0 0
      %544 = vmatprep.subr.bf16.mxu0 0
      %545 = vmatpush1.bf16.msra.mxu0 0
      %546 = vmatprep.subr.bf16.mxu0 0
      %547 = vmatpush1.bf16.msra.mxu0 0
      %548 = vmatprep.subr.bf16.mxu0 0
      %549 = vmatpush1.bf16.msra.mxu0 0
      %550 = vmatprep.subr.bf16.mxu0 0
      %551 = vmatpush1.bf16.msra.mxu0 0
      %552 = vmatprep.subr.bf16.mxu0 0
      %553 = vmatpush1.bf16.msra.mxu0 0
      %554 = vmatprep.subr.bf16.mxu0 0
      %555 = vmatpush1.bf16.msra.mxu0 0
      %556 = vmatprep.subr.bf16.mxu0 0
      %557 = vmatpush1.bf16.msra.mxu0 0
      %558 = vmatprep.subr.bf16.mxu0 0
      %559 = vmatpush1.bf16.msra.mxu0 0
      %560 = vmatprep.subr.bf16.mxu0 0
      %561 = vmatpush1.bf16.msra.mxu0 0
      %562 = vmatprep.subr.bf16.mxu0 0
      %563 = vmatpush1.bf16.msra.mxu0 0
      %564 = vmatprep.subr.bf16.mxu0 0
      %565 = vmatpush1.bf16.msra.mxu0 0
      %566 = vmatprep.subr.bf16.mxu0 0
      %567 = vmatpush1.bf16.msra.mxu0 0
      %568 = vmatprep.subr.bf16.mxu0 0
      %569 = vmatpush1.bf16.msra.mxu0 0
      %570 = vmatprep.subr.bf16.mxu0 0
      %571 = vmatpush1.bf16.msra.mxu0 0
      %572 = vmatprep.mubr.bf16.mxu0 0
      %573 = vmatmul.mubr.bf16.gmra.mrb[0].mxu0 %v513
      %v574 = vpop.f32.mrb[0].mxu0
      %v575 = vadd.f32 %v469, %v574
      %v576 = vpop.f32.mrb[0].mxu0
      %v577 = vpop.f32.mrb[0].mxu0
      %v578 = vadd.f32 %v469, %v577
      %v579 = vpop.f32.mrb[0].mxu0
      %580 = vmatprep.mubr.bf16.mxu0 0
      %581 = vmatmul.mubr.bf16.gmra.mrb[0].mxu0 %v516
      %v582 = vpop.f32.mrb[0].mxu0
      %v583 = vadd.f32 %v469, %v582
      %v584 = vpop.f32.mrb[0].mxu0
      %v585 = vpop.f32.mrb[0].mxu0
      %v586 = vadd.f32 %v469, %v585
      %v587 = vpop.f32.mrb[0].mxu0
      %588 = vmatprep.mubr.bf16.mxu0 0
      %589 = vmatmul.mubr.bf16.gmra.mrb[0].mxu0 %v519
      %v590 = vpop.f32.mrb[0].mxu0
      %v591 = vadd.f32 %v469, %v590
      %v592 = vpop.f32.mrb[0].mxu0
      %v593 = vpop.f32.mrb[0].mxu0
      %v594 = vadd.f32 %v469, %v593
      %v595 = vpop.f32.mrb[0].mxu0
      %596 = vmatprep.mubr.bf16.mxu0 0
      %597 = vmatmul.mubr.bf16.gmra.mrb[0].mxu0 %v522
      %v598 = vpop.f32.mrb[0].mxu0
      %v599 = vadd.f32 %v469, %v598
      %v600 = vpop.f32.mrb[0].mxu0
      %v601 = vpop.f32.mrb[0].mxu0
      %v602 = vadd.f32 %v469, %v601
      %v603 = vpop.f32.mrb[0].mxu0
      %604 = vmatprep.mubr.bf16.mxu0 0
      %605 = vmatmul.mubr.bf16.gmra.mrb[0].mxu0 %v525
      %v606 = vpop.f32.mrb[0].mxu0
      %v607 = vadd.f32 %v469, %v606
      %v608 = vpop.f32.mrb[0].mxu0
      %v609 = vpop.f32.mrb[0].mxu0
      %v610 = vadd.f32 %v469, %v609
      %v611 = vpop.f32.mrb[0].mxu0
      %612 = vmatprep.mubr.bf16.mxu0 0
      %613 = vmatmul.mubr.bf16.gmra.mrb[0].mxu0 %v528
      %v614 = vpop.f32.mrb[0].mxu0
      %v615 = vadd.f32 %v469, %v614
      %v616 = vpop.f32.mrb[0].mxu0
      %v617 = vpop.f32.mrb[0].mxu0
      %v618 = vadd.f32 %v469, %v617
      %v619 = vpop.f32.mrb[0].mxu0
      %620 = vmatprep.mubr.bf16.mxu0 0
      %621 = vmatmul.mubr.bf16.gmra.mrb[0].mxu0 %v531
      %v622 = vpop.f32.mrb[0].mxu0
      %v623 = vadd.f32 %v469, %v622
      %v624 = vpop.f32.mrb[0].mxu0
      %v625 = vpop.f32.mrb[0].mxu0
      %v626 = vadd.f32 %v469, %v625
      %v627 = vpop.f32.mrb[0].mxu0
      %628 = vmatprep.mubr.bf16.mxu0 0
      %629 = vmatmul.mubr.bf16.gmra.mrb[0].mxu0 %v534
      %v630 = vpop.f32.mrb[0].mxu0
      %v631 = vadd.f32 %v469, %v630
      %v632 = vpop.f32.mrb[0].mxu0
      %v633 = vpop.f32.mrb[0].mxu0
      %v634 = vadd.f32 %v469, %v633
      %v635 = vpop.f32.mrb[0].mxu0
      %636 = vdwg.mxu0
      %vm637 = vcmp.gt.f32.partialorder %v575, 0.0
      %vm638 = vcmp.gt.f32.partialorder %v578, 0.0
      %vm639 = vcmp.gt.f32.partialorder %v583, 0.0
      %vm640 = vcmp.gt.f32.partialorder %v586, 0.0
      %vm641 = vcmp.gt.f32.partialorder %v591, 0.0
      %vm642 = vcmp.gt.f32.partialorder %v594, 0.0
      %vm643 = vcmp.gt.f32.partialorder %v599, 0.0
      %vm644 = vcmp.gt.f32.partialorder %v602, 0.0
      %vm645 = vcmp.gt.f32.partialorder %v607, 0.0
      %vm646 = vcmp.gt.f32.partialorder %v610, 0.0
      %vm647 = vcmp.gt.f32.partialorder %v615, 0.0
      %vm648 = vcmp.gt.f32.partialorder %v618, 0.0
      %vm649 = vcmp.gt.f32.partialorder %v623, 0.0
      %vm650 = vcmp.gt.f32.partialorder %v626, 0.0
      %vm651 = vcmp.gt.f32.partialorder %v631, 0.0
      %vm652 = vcmp.gt.f32.partialorder %v634, 0.0
      %v653 = vmul.f32 %v575, 0.1
      %v654 = vmul.f32 %v578, 0.1
      %v655 = vmul.f32 %v583, 0.1
      %v656 = vmul.f32 %v586, 0.1
      %v657 = vmul.f32 %v591, 0.1
      %v658 = vmul.f32 %v594, 0.1
      %v659 = vmul.f32 %v599, 0.1
      %v660 = vmul.f32 %v602, 0.1
      %v661 = vmul.f32 %v607, 0.1
      %v662 = vmul.f32 %v610, 0.1
      %v663 = vmul.f32 %v615, 0.1
      %v664 = vmul.f32 %v618, 0.1
      %v665 = vmul.f32 %v623, 0.1
      %v666 = vmul.f32 %v626, 0.1
      %v667 = vmul.f32 %v631, 0.1
      %v668 = vmul.f32 %v634, 0.1
      %v669 = vsel %vm637, %v575, %v653
      %v670 = vsel %vm638, %v578, %v654
      %v671 = vsel %vm639, %v583, %v655
      %v672 = vsel %vm640, %v586, %v656
      %v673 = vsel %vm641, %v591, %v657
      %v674 = vsel %vm642, %v594, %v658
      %v675 = vsel %vm643, %v599, %v659
      %v676 = vsel %vm644, %v602, %v660
      %v677 = vsel %vm645, %v607, %v661
      %v678 = vsel %vm646, %v610, %v662
      %v679 = vsel %vm647, %v615, %v663
      %v680 = vsel %vm648, %v618, %v664
      %v681 = vsel %vm649, %v623, %v665
      %v682 = vsel %vm650, %v626, %v666
      %v683 = vsel %vm651, %v631, %v667
      %v684 = vsel %vm652, %v634, %v668
      %v685 = vld [vmem:[%s412] sm:$0xf]
      %v686 = vld [vmem:[%s412 + $0x4] sm:$0xf]
      %v689 = vunpack.c.l.b16 %v685
      %v690 = vunpack.c.l.b16 %v686
      %v691 = vpack.c.b16 %v690, %v689
      %v693 = vsel %vm511, %v691, 0
      %695 = vmatprep.subr.bf16.mxu0 0
      %696 = vmatpush1.bf16.msra.mxu0 %v538
      %697 = vmatprep.subr.bf16.mxu0 0
      %698 = vmatpush1.bf16.msra.mxu0 0
      %699 = vmatprep.subr.bf16.mxu0 0
      %700 = vmatpush1.bf16.msra.mxu0 0
      %701 = vmatprep.subr.bf16.mxu0 0
      %702 = vmatpush1.bf16.msra.mxu0 0
      %703 = vmatprep.subr.bf16.mxu0 0
      %704 = vmatpush1.bf16.msra.mxu0 0
      %705 = vmatprep.subr.bf16.mxu0 0
      %706 = vmatpush1.bf16.msra.mxu0 0
      %707 = vmatprep.subr.bf16.mxu0 0
      %708 = vmatpush1.bf16.msra.mxu0 0
      %709 = vmatprep.subr.bf16.mxu0 0
      %710 = vmatpush1.bf16.msra.mxu0 0
      %711 = vmatprep.subr.bf16.mxu0 0
      %712 = vmatpush1.bf16.msra.mxu0 0
      %713 = vmatprep.subr.bf16.mxu0 0
      %714 = vmatpush1.bf16.msra.mxu0 0
      %715 = vmatprep.subr.bf16.mxu0 0
      %716 = vmatpush1.bf16.msra.mxu0 0
      %717 = vmatprep.subr.bf16.mxu0 0
      %718 = vmatpush1.bf16.msra.mxu0 0
      %719 = vmatprep.subr.bf16.mxu0 0
      %720 = vmatpush1.bf16.msra.mxu0 0
      %721 = vmatprep.subr.bf16.mxu0 0
      %722 = vmatpush1.bf16.msra.mxu0 0
      %723 = vmatprep.subr.bf16.mxu0 0
      %724 = vmatpush1.bf16.msra.mxu0 0
      %725 = vmatprep.subr.bf16.mxu0 0
      %726 = vmatpush1.bf16.msra.mxu0 0
      %727 = vmatprep.mubr.bf16.mxu0 0
      %728 = vmatmul.mubr.bf16.gmra.mrb[0].mxu0 %v693
      %v729 = vpop.f32.mrb[0].mxu0
      %v730 = vadd.f32 %v469, %v729
      %v731 = vpop.f32.mrb[0].mxu0
      %v732 = vpop.f32.mrb[0].mxu0
      %v733 = vadd.f32 %v469, %v732
      %v734 = vpop.f32.mrb[0].mxu0
      %735 = vdwg.mxu0
      %vm736 = vcmp.gt.f32.partialorder %v730, 0.0
      %vm737 = vcmp.gt.f32.partialorder %v733, 0.0
      %v738 = vmul.f32 %v730, 0.1
      %v739 = vmul.f32 %v733, 0.1
      %v740 = vsel %vm736, %v730, %v738
      %v741 = vsel %vm737, %v733, %v739
      %v742 = vld [vmem:[%s430] sm:$0xf]
      %v743 = vld [vmem:[%s430 + $0x4] sm:$0xf]
      %v746 = vunpack.c.l.b16 %v742
      %v747 = vunpack.c.l.b16 %v743
      %v748 = vpack.c.b16 %v747, %v746
      %v750 = vsel %vm511, %v748, 0
      %752 = vmatprep.subr.bf16.mxu0 0
      %753 = vmatpush1.bf16.msra.mxu0 %v538
      %754 = vmatprep.subr.bf16.mxu0 0
      %755 = vmatpush1.bf16.msra.mxu0 0
      %756 = vmatprep.subr.bf16.mxu0 0
      %757 = vmatpush1.bf16.msra.mxu0 0
      %758 = vmatprep.subr.bf16.mxu0 0
      %759 = vmatpush1.bf16.msra.mxu0 0
      %760 = vmatprep.subr.bf16.mxu0 0
      %761 = vmatpush1.bf16.msra.mxu0 0
      %762 = vmatprep.subr.bf16.mxu0 0
      %763 = vmatpush1.bf16.msra.mxu0 0
      %764 = vmatprep.subr.bf16.mxu0 0
      %765 = vmatpush1.bf16.msra.mxu0 0
      %766 = vmatprep.subr.bf16.mxu0 0
      %767 = vmatpush1.bf16.msra.mxu0 0
      %768 = vmatprep.subr.bf16.mxu0 0
      %769 = vmatpush1.bf16.msra.mxu0 0
      %770 = vmatprep.subr.bf16.mxu0 0
      %771 = vmatpush1.bf16.msra.mxu0 0
      %772 = vmatprep.subr.bf16.mxu0 0
      %773 = vmatpush1.bf16.msra.mxu0 0
      %774 = vmatprep.subr.bf16.mxu0 0
      %775 = vmatpush1.bf16.msra.mxu0 0
      %776 = vmatprep.subr.bf16.mxu0 0
      %777 = vmatpush1.bf16.msra.mxu0 0
      %778 = vmatprep.subr.bf16.mxu0 0
      %779 = vmatpush1.bf16.msra.mxu0 0
      %780 = vmatprep.subr.bf16.mxu0 0
      %781 = vmatpush1.bf16.msra.mxu0 0
      %782 = vmatprep.subr.bf16.mxu0 0
      %783 = vmatpush1.bf16.msra.mxu0 0
      %784 = vmatprep.mubr.bf16.mxu0 0
      %785 = vmatmul.mubr.bf16.gmra.mrb[0].mxu0 %v750
      %v786 = vpop.f32.mrb[0].mxu0
      %v787 = vadd.f32 %v469, %v786
      %v788 = vpop.f32.mrb[0].mxu0
      %v789 = vpop.f32.mrb[0].mxu0
      %v790 = vadd.f32 %v469, %v789
      %v791 = vpop.f32.mrb[0].mxu0
      %792 = vdwg.mxu0
      %vm793 = vcmp.gt.f32.partialorder %v787, 0.0
      %vm794 = vcmp.gt.f32.partialorder %v790, 0.0
      %v795 = vmul.f32 %v787, 0.1
      %v796 = vmul.f32 %v790, 0.1
      %v797 = vsel %vm793, %v787, %v795
      %v798 = vsel %vm794, %v790, %v796
      %p799 = scmp.gt.s32.totalorder %s23, 0
      %s800 = scalar_select %p799, 1, 0
      %s801 = scvt.s32.f32 %s800
      %v802 = vstv %s801
      %v803 = vmul.f32 %v740, %v802
      %v804 = vmul.f32 %v741, %v802
      %p805 = scmp.lt.s32.totalorder %s23, 1
      %s806 = scalar_select %p805, 1, 0
      %s807 = scvt.s32.f32 %s806
      %v808 = vstv %s807
      %v809 = vmul.f32 %v797, %v808
      %v810 = vmul.f32 %v798, %v808
      %v811 = vlaneseq
      %v812 = vshrl.u32 %v811, 7
      %v813 = vadd.s32 %v812, 8
      %v814 = vadd.s32 %v812, 16
      %v815 = vadd.s32 %v812, 24
      %v816 = vadd.s32 %v812, 32
      %v817 = vadd.s32 %v812, 40
      %v818 = vadd.s32 %v812, 48
      %v819 = vadd.s32 %v812, 56
      %v820 = vadd.s32 %v812, 64
      %v821 = vadd.s32 %v812, 72
      %v822 = vadd.s32 %v812, 80
      %v823 = vadd.s32 %v812, 88
      %v824 = vadd.s32 %v812, 96
      %v825 = vadd.s32 %v812, 104
      %v826 = vadd.s32 %v812, 112
      %v827 = vadd.s32 %v812, 120
      %v828 = vadd.s32 %v812, 128
      %v829 = vadd.s32 %v812, 136
      %v830 = vadd.s32 %v812, 144
      %v831 = vadd.s32 %v812, 152
      %vm832 = vcmp.lt.s32.totalorder %v812, 0
      %v833 = vsub.s32 0, %v812
      %v834 = vsel %vm832, %v833, %v812
      %v835 = vshrl.u32 %v834, 4
      %v836 = vand.u32 %v834, 15
      %v837 = vsub.s32 0, %v836
      %v838 = vsel %vm832, %v837, %v836
      %vm839 = vcmp.lt.s32.totalorder %v813, 0
      %v840 = vsub.s32 0, %v813
      %v841 = vsel %vm839, %v840, %v813
      %v842 = vshrl.u32 %v841, 4
      %v843 = vand.u32 %v841, 15
      %v844 = vsub.s32 0, %v843
      %v845 = vsel %vm839, %v844, %v843
      %vm846 = vcmp.lt.s32.totalorder %v814, 0
      %v847 = vsub.s32 0, %v814
      %v848 = vsel %vm846, %v847, %v814
      %v849 = vshrl.u32 %v848, 4
      %v850 = vand.u32 %v848, 15
      %v851 = vsub.s32 0, %v850
      %v852 = vsel %vm846, %v851, %v850
      %vm853 = vcmp.lt.s32.totalorder %v815, 0
      %v854 = vsub.s32 0, %v815
      %v855 = vsel %vm853, %v854, %v815
      %v856 = vshrl.u32 %v855, 4
      %v857 = vand.u32 %v855, 15
      %v858 = vsub.s32 0, %v857
      %v859 = vsel %vm853, %v858, %v857
      %vm860 = vcmp.lt.s32.totalorder %v816, 0
      %v861 = vsub.s32 0, %v816
      %v862 = vsel %vm860, %v861, %v816
      %v863 = vshrl.u32 %v862, 4
      %v864 = vand.u32 %v862, 15
      %v865 = vsub.s32 0, %v864
      %v866 = vsel %vm860, %v865, %v864
      %vm867 = vcmp.lt.s32.totalorder %v817, 0
      %v868 = vsub.s32 0, %v817
      %v869 = vsel %vm867, %v868, %v817
      %v870 = vshrl.u32 %v869, 4
      %v871 = vand.u32 %v869, 15
      %v872 = vsub.s32 0, %v871
      %v873 = vsel %vm867, %v872, %v871
      %vm874 = vcmp.lt.s32.totalorder %v818, 0
      %v875 = vsub.s32 0, %v818
      %v876 = vsel %vm874, %v875, %v818
      %v877 = vshrl.u32 %v876, 4
      %v878 = vand.u32 %v876, 15
      %v879 = vsub.s32 0, %v878
      %v880 = vsel %vm874, %v879, %v878
      %vm881 = vcmp.lt.s32.totalorder %v819, 0
      %v882 = vsub.s32 0, %v819
      %v883 = vsel %vm881, %v882, %v819
      %v884 = vshrl.u32 %v883, 4
      %v885 = vand.u32 %v883, 15
      %v886 = vsub.s32 0, %v885
      %v887 = vsel %vm881, %v886, %v885
      %vm888 = vcmp.lt.s32.totalorder %v820, 0
      %v889 = vsub.s32 0, %v820
      %v890 = vsel %vm888, %v889, %v820
      %v891 = vshrl.u32 %v890, 4
      %v892 = vand.u32 %v890, 15
      %v893 = vsub.s32 0, %v892
      %v894 = vsel %vm888, %v893, %v892
      %vm895 = vcmp.lt.s32.totalorder %v821, 0
      %v896 = vsub.s32 0, %v821
      %v897 = vsel %vm895, %v896, %v821
      %v898 = vshrl.u32 %v897, 4
      %v899 = vand.u32 %v897, 15
      %v900 = vsub.s32 0, %v899
      %v901 = vsel %vm895, %v900, %v899
      %vm902 = vcmp.lt.s32.totalorder %v822, 0
      %v903 = vsub.s32 0, %v822
      %v904 = vsel %vm902, %v903, %v822
      %v905 = vshrl.u32 %v904, 4
      %v906 = vand.u32 %v904, 15
      %v907 = vsub.s32 0, %v906
      %v908 = vsel %vm902, %v907, %v906
      %vm909 = vcmp.lt.s32.totalorder %v823, 0
      %v910 = vsub.s32 0, %v823
      %v911 = vsel %vm909, %v910, %v823
      %v912 = vshrl.u32 %v911, 4
      %v913 = vand.u32 %v911, 15
      %v914 = vsub.s32 0, %v913
      %v915 = vsel %vm909, %v914, %v913
      %vm916 = vcmp.lt.s32.totalorder %v824, 0
      %v917 = vsub.s32 0, %v824
      %v918 = vsel %vm916, %v917, %v824
      %v919 = vshrl.u32 %v918, 4
      %v920 = vand.u32 %v918, 15
      %v921 = vsub.s32 0, %v920
      %v922 = vsel %vm916, %v921, %v920
      %vm923 = vcmp.lt.s32.totalorder %v825, 0
      %v924 = vsub.s32 0, %v825
      %v925 = vsel %vm923, %v924, %v825
      %v926 = vshrl.u32 %v925, 4
      %v927 = vand.u32 %v925, 15
      %v928 = vsub.s32 0, %v927
      %v929 = vsel %vm923, %v928, %v927
      %vm930 = vcmp.lt.s32.totalorder %v826, 0
      %v931 = vsub.s32 0, %v826
      %v932 = vsel %vm930, %v931, %v826
      %v933 = vshrl.u32 %v932, 4
      %v934 = vand.u32 %v932, 15
      %v935 = vsub.s32 0, %v934
      %v936 = vsel %vm930, %v935, %v934
      %vm937 = vcmp.lt.s32.totalorder %v827, 0
      %v938 = vsub.s32 0, %v827
      %v939 = vsel %vm937, %v938, %v827
      %v940 = vshrl.u32 %v939, 4
      %v941 = vand.u32 %v939, 15
      %v942 = vsub.s32 0, %v941
      %v943 = vsel %vm937, %v942, %v941
      %vm944 = vcmp.lt.s32.totalorder %v828, 0
      %v945 = vsub.s32 0, %v828
      %v946 = vsel %vm944, %v945, %v828
      %v947 = vshrl.u32 %v946, 4
      %v948 = vand.u32 %v946, 15
      %v949 = vsub.s32 0, %v948
      %v950 = vsel %vm944, %v949, %v948
      %vm951 = vcmp.lt.s32.totalorder %v829, 0
      %v952 = vsub.s32 0, %v829
      %v953 = vsel %vm951, %v952, %v829
      %v954 = vshrl.u32 %v953, 4
      %v955 = vand.u32 %v953, 15
      %v956 = vsub.s32 0, %v955
      %v957 = vsel %vm951, %v956, %v955
      %vm958 = vcmp.lt.s32.totalorder %v830, 0
      %v959 = vsub.s32 0, %v830
      %v960 = vsel %vm958, %v959, %v830
      %v961 = vshrl.u32 %v960, 4
      %v962 = vand.u32 %v960, 15
      %v963 = vsub.s32 0, %v962
      %v964 = vsel %vm958, %v963, %v962
      %vm965 = vcmp.lt.s32.totalorder %v831, 0
      %v966 = vsub.s32 0, %v831
      %v967 = vsel %vm965, %v966, %v831
      %v968 = vshrl.u32 %v967, 4
      %v969 = vand.u32 %v967, 15
      %v970 = vsub.s32 0, %v969
      %v971 = vsel %vm965, %v970, %v969
      %vm972 = vcmp.ne.s32.totalorder %v838, 0
      %vm973 = vcmp.ne.s32.totalorder %v845, 0
      %vm974 = vcmp.ne.s32.totalorder %v852, 0
      %vm975 = vcmp.ne.s32.totalorder %v859, 0
      %vm976 = vcmp.ne.s32.totalorder %v866, 0
      %vm977 = vcmp.ne.s32.totalorder %v873, 0
      %vm978 = vcmp.ne.s32.totalorder %v880, 0
      %vm979 = vcmp.ne.s32.totalorder %v887, 0
      %vm980 = vcmp.ne.s32.totalorder %v894, 0
      %vm981 = vcmp.ne.s32.totalorder %v901, 0
      %vm982 = vcmp.ne.s32.totalorder %v908, 0
      %vm983 = vcmp.ne.s32.totalorder %v915, 0
      %vm984 = vcmp.ne.s32.totalorder %v922, 0
      %vm985 = vcmp.ne.s32.totalorder %v929, 0
      %vm986 = vcmp.ne.s32.totalorder %v936, 0
      %vm987 = vcmp.ne.s32.totalorder %v943, 0
      %vm988 = vcmp.ne.s32.totalorder %v950, 0
      %vm989 = vcmp.ne.s32.totalorder %v957, 0
      %vm990 = vcmp.ne.s32.totalorder %v964, 0
      %vm991 = vcmp.ne.s32.totalorder %v971, 0
      %vm992 = vcmp.lt.s32.totalorder %v838, 0
      %vm993 = vcmp.lt.s32.totalorder %v845, 0
      %vm994 = vcmp.lt.s32.totalorder %v852, 0
      %vm995 = vcmp.lt.s32.totalorder %v859, 0
      %vm996 = vcmp.lt.s32.totalorder %v866, 0
      %vm997 = vcmp.lt.s32.totalorder %v873, 0
      %vm998 = vcmp.lt.s32.totalorder %v880, 0
      %vm999 = vcmp.lt.s32.totalorder %v887, 0
      %vm1000 = vcmp.lt.s32.totalorder %v894, 0
      %vm1001 = vcmp.lt.s32.totalorder %v901, 0
      %vm1002 = vcmp.lt.s32.totalorder %v908, 0
      %vm1003 = vcmp.lt.s32.totalorder %v915, 0
      %vm1004 = vcmp.lt.s32.totalorder %v922, 0
      %vm1005 = vcmp.lt.s32.totalorder %v929, 0
      %vm1006 = vcmp.lt.s32.totalorder %v936, 0
      %vm1007 = vcmp.lt.s32.totalorder %v943, 0
      %vm1008 = vcmp.lt.s32.totalorder %v950, 0
      %vm1009 = vcmp.lt.s32.totalorder %v957, 0
      %vm1010 = vcmp.lt.s32.totalorder %v964, 0
      %vm1011 = vcmp.lt.s32.totalorder %v971, 0
      %vm1012 = vmand %vm992, %vm972
      %vm1013 = vmand %vm993, %vm973
      %vm1014 = vmand %vm994, %vm974
      %vm1015 = vmand %vm995, %vm975
      %vm1016 = vmand %vm996, %vm976
      %vm1017 = vmand %vm997, %vm977
      %vm1018 = vmand %vm998, %vm978
      %vm1019 = vmand %vm999, %vm979
      %vm1020 = vmand %vm1000, %vm980
      %vm1021 = vmand %vm1001, %vm981
      %vm1022 = vmand %vm1002, %vm982
      %vm1023 = vmand %vm1003, %vm983
      %vm1024 = vmand %vm1004, %vm984
      %vm1025 = vmand %vm1005, %vm985
      %vm1026 = vmand %vm1006, %vm986
      %vm1027 = vmand %vm1007, %vm987
      %vm1028 = vmand %vm1008, %vm988
      %vm1029 = vmand %vm1009, %vm989
      %vm1030 = vmand %vm1010, %vm990
      %vm1031 = vmand %vm1011, %vm991
      %v1032 = vadd.s32 %v838, 16
      %v1033 = vadd.s32 %v845, 16
      %v1034 = vadd.s32 %v852, 16
      %v1035 = vadd.s32 %v859, 16
      %v1036 = vadd.s32 %v866, 16
      %v1037 = vadd.s32 %v873, 16
      %v1038 = vadd.s32 %v880, 16
      %v1039 = vadd.s32 %v887, 16
      %v1040 = vadd.s32 %v894, 16
      %v1041 = vadd.s32 %v901, 16
      %v1042 = vadd.s32 %v908, 16
      %v1043 = vadd.s32 %v915, 16
      %v1044 = vadd.s32 %v922, 16
      %v1045 = vadd.s32 %v929, 16
      %v1046 = vadd.s32 %v936, 16
      %v1047 = vadd.s32 %v943, 16
      %v1048 = vadd.s32 %v950, 16
      %v1049 = vadd.s32 %v957, 16
      %v1050 = vadd.s32 %v964, 16
      %v1051 = vadd.s32 %v971, 16
      %v1052 = vsel %vm1012, %v1032, %v838
      %v1053 = vsel %vm1013, %v1033, %v845
      %v1054 = vsel %vm1014, %v1034, %v852
      %v1055 = vsel %vm1015, %v1035, %v859
      %v1056 = vsel %vm1016, %v1036, %v866
      %v1057 = vsel %vm1017, %v1037, %v873
      %v1058 = vsel %vm1018, %v1038, %v880
      %v1059 = vsel %vm1019, %v1039, %v887
      %v1060 = vsel %vm1020, %v1040, %v894
      %v1061 = vsel %vm1021, %v1041, %v901
      %v1062 = vsel %vm1022, %v1042, %v908
      %v1063 = vsel %vm1023, %v1043, %v915
      %v1064 = vsel %vm1024, %v1044, %v922
      %v1065 = vsel %vm1025, %v1045, %v929
      %v1066 = vsel %vm1026, %v1046, %v936
      %v1067 = vsel %vm1027, %v1047, %v943
      %v1068 = vsel %vm1028, %v1048, %v950
      %v1069 = vsel %vm1029, %v1049, %v957
      %v1070 = vsel %vm1030, %v1050, %v964
      %v1071 = vsel %vm1031, %v1051, %v971
      %vm1072 = vcmp.ne.s32.totalorder %v1052, 0
      %vm1073 = vcmp.ne.s32.totalorder %v1053, 0
      %vm1074 = vcmp.ne.s32.totalorder %v1054, 0
      %vm1075 = vcmp.ne.s32.totalorder %v1055, 0
      %vm1076 = vcmp.ne.s32.totalorder %v1056, 0
      %vm1077 = vcmp.ne.s32.totalorder %v1057, 0
      %vm1078 = vcmp.ne.s32.totalorder %v1058, 0
      %vm1079 = vcmp.ne.s32.totalorder %v1059, 0
      %vm1080 = vcmp.ne.s32.totalorder %v1060, 0
      %vm1081 = vcmp.ne.s32.totalorder %v1061, 0
      %vm1082 = vcmp.ne.s32.totalorder %v1062, 0
      %vm1083 = vcmp.ne.s32.totalorder %v1063, 0
      %vm1084 = vcmp.ne.s32.totalorder %v1064, 0
      %vm1085 = vcmp.ne.s32.totalorder %v1065, 0
      %vm1086 = vcmp.ne.s32.totalorder %v1066, 0
      %vm1087 = vcmp.ne.s32.totalorder %v1067, 0
      %vm1088 = vcmp.ne.s32.totalorder %v1068, 0
      %vm1089 = vcmp.ne.s32.totalorder %v1069, 0
      %vm1090 = vcmp.ne.s32.totalorder %v1070, 0
      %vm1091 = vcmp.ne.s32.totalorder %v1071, 0
      %vm1112 = vcmask 1040384
      %v1113 = vrot.slane %v803, 7
      %v1114 = vrot.slane %v804, 7
      %v1115 = vsel %vm1112, %v1113, %v1114
      %v1116 = vrot.slane %v669, 7
      %v1117 = vsel %vm1112, %v1114, %v1116
      %v1118 = vrot.slane %v670, 7
      %v1119 = vsel %vm1112, %v1116, %v1118
      %v1120 = vrot.slane %v671, 7
      %v1121 = vsel %vm1112, %v1118, %v1120
      %v1122 = vrot.slane %v672, 7
      %v1123 = vsel %vm1112, %v1120, %v1122
      %v1124 = vrot.slane %v673, 7
      %v1125 = vsel %vm1112, %v1122, %v1124
      %v1126 = vrot.slane %v674, 7
      %v1127 = vsel %vm1112, %v1124, %v1126
      %v1128 = vrot.slane %v675, 7
      %v1129 = vsel %vm1112, %v1126, %v1128
      %v1130 = vrot.slane %v676, 7
      %v1131 = vsel %vm1112, %v1128, %v1130
      %v1132 = vrot.slane %v677, 7
      %v1133 = vsel %vm1112, %v1130, %v1132
      %v1134 = vrot.slane %v678, 7
      %v1135 = vsel %vm1112, %v1132, %v1134
      %v1136 = vrot.slane %v679, 7
      %v1137 = vsel %vm1112, %v1134, %v1136
      %v1138 = vrot.slane %v680, 7
      %v1139 = vsel %vm1112, %v1136, %v1138
      %v1140 = vrot.slane %v681, 7
      %v1141 = vsel %vm1112, %v1138, %v1140
      %v1142 = vrot.slane %v682, 7
      %v1143 = vsel %vm1112, %v1140, %v1142
      %v1144 = vrot.slane %v683, 7
      %v1145 = vsel %vm1112, %v1142, %v1144
      %v1146 = vrot.slane %v684, 7
      %v1147 = vsel %vm1112, %v1144, %v1146
      %v1148 = vrot.slane %v809, 7
      %v1149 = vsel %vm1112, %v1146, %v1148
      %v1150 = vrot.slane %v810, 7
      %v1151 = vsel %vm1112, %v1148, %v1150
      %v1172 = vsel %vm1112, 0.0, %v1113
      %v1173 = vsel %vm1072, 1, 0
      %v1174 = vsel %vm1073, 1, 0
      %v1175 = vsel %vm1074, 1, 0
      %v1176 = vsel %vm1075, 1, 0
      %v1177 = vsel %vm1076, 1, 0
      %v1178 = vsel %vm1077, 1, 0
      %v1179 = vsel %vm1078, 1, 0
      %v1180 = vsel %vm1079, 1, 0
      %v1181 = vsel %vm1080, 1, 0
      %v1182 = vsel %vm1081, 1, 0
      %v1183 = vsel %vm1082, 1, 0
      %v1184 = vsel %vm1083, 1, 0
      %v1185 = vsel %vm1084, 1, 0
      %v1186 = vsel %vm1085, 1, 0
      %v1187 = vsel %vm1086, 1, 0
      %v1188 = vsel %vm1087, 1, 0
      %v1189 = vsel %vm1088, 1, 0
      %v1190 = vsel %vm1089, 1, 0
      %v1191 = vsel %vm1090, 1, 0
      %v1192 = vsel %vm1091, 1, 0
      %vm1193 = vcmp.eq.s32.totalorder %v1173, 1
      %vm1194 = vcmp.eq.s32.totalorder %v1174, 1
      %vm1195 = vcmp.eq.s32.totalorder %v1175, 1
      %vm1196 = vcmp.eq.s32.totalorder %v1176, 1
      %vm1197 = vcmp.eq.s32.totalorder %v1177, 1
      %vm1198 = vcmp.eq.s32.totalorder %v1178, 1
      %vm1199 = vcmp.eq.s32.totalorder %v1179, 1
      %vm1200 = vcmp.eq.s32.totalorder %v1180, 1
      %vm1201 = vcmp.eq.s32.totalorder %v1181, 1
      %vm1202 = vcmp.eq.s32.totalorder %v1182, 1
      %vm1203 = vcmp.eq.s32.totalorder %v1183, 1
      %vm1204 = vcmp.eq.s32.totalorder %v1184, 1
      %vm1205 = vcmp.eq.s32.totalorder %v1185, 1
      %vm1206 = vcmp.eq.s32.totalorder %v1186, 1
      %vm1207 = vcmp.eq.s32.totalorder %v1187, 1
      %vm1208 = vcmp.eq.s32.totalorder %v1188, 1
      %vm1209 = vcmp.eq.s32.totalorder %v1189, 1
      %vm1210 = vcmp.eq.s32.totalorder %v1190, 1
      %vm1211 = vcmp.eq.s32.totalorder %v1191, 1
      %vm1212 = vcmp.eq.s32.totalorder %v1192, 1
      %v1213 = vsel %vm1193, %v1172, 0.0
      %v1214 = vsel %vm1194, %v1115, 0.0
      %v1215 = vsel %vm1195, %v1117, 0.0
      %v1216 = vsel %vm1196, %v1119, 0.0
      %v1217 = vsel %vm1197, %v1121, 0.0
      %v1218 = vsel %vm1198, %v1123, 0.0
      %v1219 = vsel %vm1199, %v1125, 0.0
      %v1220 = vsel %vm1200, %v1127, 0.0
      %v1221 = vsel %vm1201, %v1129, 0.0
      %v1222 = vsel %vm1202, %v1131, 0.0
      %v1223 = vsel %vm1203, %v1133, 0.0
      %v1224 = vsel %vm1204, %v1135, 0.0
      %v1225 = vsel %vm1205, %v1137, 0.0
      %v1226 = vsel %vm1206, %v1139, 0.0
      %v1227 = vsel %vm1207, %v1141, 0.0
      %v1228 = vsel %vm1208, %v1143, 0.0
      %v1229 = vsel %vm1209, %v1145, 0.0
      %v1230 = vsel %vm1210, %v1147, 0.0
      %v1231 = vsel %vm1211, %v1149, 0.0
      %v1232 = vsel %vm1212, %v1151, 0.0
      %vm1233 = vcmp.ne.s32.totalorder %v1052, 15
      %vm1234 = vcmp.ne.s32.totalorder %v1053, 15
      %vm1235 = vcmp.ne.s32.totalorder %v1054, 15
      %vm1236 = vcmp.ne.s32.totalorder %v1055, 15
      %vm1237 = vcmp.ne.s32.totalorder %v1056, 15
      %vm1238 = vcmp.ne.s32.totalorder %v1057, 15
      %vm1239 = vcmp.ne.s32.totalorder %v1058, 15
      %vm1240 = vcmp.ne.s32.totalorder %v1059, 15
      %vm1241 = vcmp.ne.s32.totalorder %v1060, 15
      %vm1242 = vcmp.ne.s32.totalorder %v1061, 15
      %vm1243 = vcmp.ne.s32.totalorder %v1062, 15
      %vm1244 = vcmp.ne.s32.totalorder %v1063, 15
      %vm1245 = vcmp.ne.s32.totalorder %v1064, 15
      %vm1246 = vcmp.ne.s32.totalorder %v1065, 15
      %vm1247 = vcmp.ne.s32.totalorder %v1066, 15
      %vm1248 = vcmp.ne.s32.totalorder %v1067, 15
      %vm1249 = vcmp.ne.s32.totalorder %v1068, 15
      %vm1250 = vcmp.ne.s32.totalorder %v1069, 15
      %vm1251 = vcmp.ne.s32.totalorder %v1070, 15
      %vm1252 = vcmp.ne.s32.totalorder %v1071, 15
      %vm1253 = vcmask 1046528
      %v1254 = vrot.slane %v803, 1
      %v1255 = vrot.slane %v804, 1
      %v1256 = vsel %vm1253, %v1254, %v1255
      %v1257 = vrot.slane %v669, 1
      %v1258 = vsel %vm1253, %v1255, %v1257
      %v1259 = vrot.slane %v670, 1
      %v1260 = vsel %vm1253, %v1257, %v1259
      %v1261 = vrot.slane %v671, 1
      %v1262 = vsel %vm1253, %v1259, %v1261
      %v1263 = vrot.slane %v672, 1
      %v1264 = vsel %vm1253, %v1261, %v1263
      %v1265 = vrot.slane %v673, 1
      %v1266 = vsel %vm1253, %v1263, %v1265
      %v1267 = vrot.slane %v674, 1
      %v1268 = vsel %vm1253, %v1265, %v1267
      %v1269 = vrot.slane %v675, 1
      %v1270 = vsel %vm1253, %v1267, %v1269
      %v1271 = vrot.slane %v676, 1
      %v1272 = vsel %vm1253, %v1269, %v1271
      %v1273 = vrot.slane %v677, 1
      %v1274 = vsel %vm1253, %v1271, %v1273
      %v1275 = vrot.slane %v678, 1
      %v1276 = vsel %vm1253, %v1273, %v1275
      %v1277 = vrot.slane %v679, 1
      %v1278 = vsel %vm1253, %v1275, %v1277
      %v1279 = vrot.slane %v680, 1
      %v1280 = vsel %vm1253, %v1277, %v1279
      %v1281 = vrot.slane %v681, 1
      %v1282 = vsel %vm1253, %v1279, %v1281
      %v1283 = vrot.slane %v682, 1
      %v1284 = vsel %vm1253, %v1281, %v1283
      %v1285 = vrot.slane %v683, 1
      %v1286 = vsel %vm1253, %v1283, %v1285
      %v1287 = vrot.slane %v684, 1
      %v1288 = vsel %vm1253, %v1285, %v1287
      %v1289 = vrot.slane %v809, 1
      %v1290 = vsel %vm1253, %v1287, %v1289
      %v1291 = vrot.slane %v810, 1
      %v1292 = vsel %vm1253, %v1289, %v1291
      %v1313 = vsel %vm1253, %v1291, 0.0
      %v1314 = vsel %vm1233, 1, 0
      %v1315 = vsel %vm1234, 1, 0
      %v1316 = vsel %vm1235, 1, 0
      %v1317 = vsel %vm1236, 1, 0
      %v1318 = vsel %vm1237, 1, 0
      %v1319 = vsel %vm1238, 1, 0
      %v1320 = vsel %vm1239, 1, 0
      %v1321 = vsel %vm1240, 1, 0
      %v1322 = vsel %vm1241, 1, 0
      %v1323 = vsel %vm1242, 1, 0
      %v1324 = vsel %vm1243, 1, 0
      %v1325 = vsel %vm1244, 1, 0
      %v1326 = vsel %vm1245, 1, 0
      %v1327 = vsel %vm1246, 1, 0
      %v1328 = vsel %vm1247, 1, 0
      %v1329 = vsel %vm1248, 1, 0
      %v1330 = vsel %vm1249, 1, 0
      %v1331 = vsel %vm1250, 1, 0
      %v1332 = vsel %vm1251, 1, 0
      %v1333 = vsel %vm1252, 1, 0
      %vm1334 = vcmp.eq.s32.totalorder %v1314, 1
      %vm1335 = vcmp.eq.s32.totalorder %v1315, 1
      %vm1336 = vcmp.eq.s32.totalorder %v1316, 1
      %vm1337 = vcmp.eq.s32.totalorder %v1317, 1
      %vm1338 = vcmp.eq.s32.totalorder %v1318, 1
      %vm1339 = vcmp.eq.s32.totalorder %v1319, 1
      %vm1340 = vcmp.eq.s32.totalorder %v1320, 1
      %vm1341 = vcmp.eq.s32.totalorder %v1321, 1
      %vm1342 = vcmp.eq.s32.totalorder %v1322, 1
      %vm1343 = vcmp.eq.s32.totalorder %v1323, 1
      %vm1344 = vcmp.eq.s32.totalorder %v1324, 1
      %vm1345 = vcmp.eq.s32.totalorder %v1325, 1
      %vm1346 = vcmp.eq.s32.totalorder %v1326, 1
      %vm1347 = vcmp.eq.s32.totalorder %v1327, 1
      %vm1348 = vcmp.eq.s32.totalorder %v1328, 1
      %vm1349 = vcmp.eq.s32.totalorder %v1329, 1
      %vm1350 = vcmp.eq.s32.totalorder %v1330, 1
      %vm1351 = vcmp.eq.s32.totalorder %v1331, 1
      %vm1352 = vcmp.eq.s32.totalorder %v1332, 1
      %vm1353 = vcmp.eq.s32.totalorder %v1333, 1
      %v1354 = vsel %vm1334, %v1256, 0.0
      %v1355 = vsel %vm1335, %v1258, 0.0
      %v1356 = vsel %vm1336, %v1260, 0.0
      %v1357 = vsel %vm1337, %v1262, 0.0
      %v1358 = vsel %vm1338, %v1264, 0.0
      %v1359 = vsel %vm1339, %v1266, 0.0
      %v1360 = vsel %vm1340, %v1268, 0.0
      %v1361 = vsel %vm1341, %v1270, 0.0
      %v1362 = vsel %vm1342, %v1272, 0.0
      %v1363 = vsel %vm1343, %v1274, 0.0
      %v1364 = vsel %vm1344, %v1276, 0.0
      %v1365 = vsel %vm1345, %v1278, 0.0
      %v1366 = vsel %vm1346, %v1280, 0.0
      %v1367 = vsel %vm1347, %v1282, 0.0
      %v1368 = vsel %vm1348, %v1284, 0.0
      %v1369 = vsel %vm1349, %v1286, 0.0
      %v1370 = vsel %vm1350, %v1288, 0.0
      %v1371 = vsel %vm1351, %v1290, 0.0
      %v1372 = vsel %vm1352, %v1292, 0.0
      %v1373 = vsel %vm1353, %v1313, 0.0
      %v1374 = vpack.c.bf16 %v804, %v803
      %v1375 = vpack.c.bf16 %v670, %v669
      %v1376 = vpack.c.bf16 %v672, %v671
      %v1377 = vpack.c.bf16 %v674, %v673
      %v1378 = vpack.c.bf16 %v676, %v675
      %v1379 = vpack.c.bf16 %v678, %v677
      %v1380 = vpack.c.bf16 %v680, %v679
      %v1381 = vpack.c.bf16 %v682, %v681
      %v1382 = vpack.c.bf16 %v684, %v683
      %v1383 = vpack.c.bf16 %v810, %v809
      %v1384 = vpack.c.bf16 %v1214, %v1213
      %v1385 = vpack.c.bf16 %v1216, %v1215
      %v1386 = vpack.c.bf16 %v1218, %v1217
      %v1387 = vpack.c.bf16 %v1220, %v1219
      %v1388 = vpack.c.bf16 %v1222, %v1221
      %v1389 = vpack.c.bf16 %v1224, %v1223
      %v1390 = vpack.c.bf16 %v1226, %v1225
      %v1391 = vpack.c.bf16 %v1228, %v1227
      %v1392 = vpack.c.bf16 %v1230, %v1229
      %v1393 = vpack.c.bf16 %v1232, %v1231
      %v1394 = vpack.c.bf16 %v1355, %v1354
      %v1395 = vpack.c.bf16 %v1357, %v1356
      %v1396 = vpack.c.bf16 %v1359, %v1358
      %v1397 = vpack.c.bf16 %v1361, %v1360
      %v1398 = vpack.c.bf16 %v1363, %v1362
      %v1399 = vpack.c.bf16 %v1365, %v1364
      %v1400 = vpack.c.bf16 %v1367, %v1366
      %v1401 = vpack.c.bf16 %v1369, %v1368
      %v1402 = vpack.c.bf16 %v1371, %v1370
      %v1403 = vpack.c.bf16 %v1373, %v1372
      %v1404 = vld [vmem:[%s5] sm:$0x3]
      %s1405 = scalar_lea.vmem %s5, 2
      %v1406 = vld [vmem:[%s1405] sm:$0x3]
      %vm1407 = vcmask 31744
      %v1409 = vsel %vm1407, %v1374, 0
      %v1412 = vsel %vm1407, %v1375, 0
      %v1415 = vsel %vm1407, %v1376, 0
      %v1418 = vsel %vm1407, %v1377, 0
      %v1421 = vsel %vm1407, %v1378, 0
      %v1424 = vsel %vm1407, %v1379, 0
      %v1427 = vsel %vm1407, %v1380, 0
      %v1430 = vsel %vm1407, %v1381, 0
      %vm1432 = vcmask 1041408
      %v1434 = vsel %vm1432, %v1406, 0
      %1436 = vmatprep.subr.bf16.mxu0 0
      %1437 = vmatpush1.bf16.msra.mxu0 %v1434
      %1438 = vmatprep.subr.bf16.mxu0 0
      %1439 = vmatpush1.bf16.msra.mxu0 0
      %1440 = vmatprep.subr.bf16.mxu0 0
      %1441 = vmatpush1.bf16.msra.mxu0 0
      %1442 = vmatprep.subr.bf16.mxu0 0
      %1443 = vmatpush1.bf16.msra.mxu0 0
      %1444 = vmatprep.subr.bf16.mxu0 0
      %1445 = vmatpush1.bf16.msra.mxu0 0
      %1446 = vmatprep.subr.bf16.mxu0 0
      %1447 = vmatpush1.bf16.msra.mxu0 0
      %1448 = vmatprep.subr.bf16.mxu0 0
      %1449 = vmatpush1.bf16.msra.mxu0 0
      %1450 = vmatprep.subr.bf16.mxu0 0
      %1451 = vmatpush1.bf16.msra.mxu0 0
      %1452 = vmatprep.subr.bf16.mxu0 0
      %1453 = vmatpush1.bf16.msra.mxu0 0
      %1454 = vmatprep.subr.bf16.mxu0 0
      %1455 = vmatpush1.bf16.msra.mxu0 0
      %1456 = vmatprep.subr.bf16.mxu0 0
      %1457 = vmatpush1.bf16.msra.mxu0 0
      %1458 = vmatprep.subr.bf16.mxu0 0
      %1459 = vmatpush1.bf16.msra.mxu0 0
      %1460 = vmatprep.subr.bf16.mxu0 0
      %1461 = vmatpush1.bf16.msra.mxu0 0
      %1462 = vmatprep.subr.bf16.mxu0 0
      %1463 = vmatpush1.bf16.msra.mxu0 0
      %1464 = vmatprep.subr.bf16.mxu0 0
      %1465 = vmatpush1.bf16.msra.mxu0 0
      %1466 = vmatprep.subr.bf16.mxu0 0
      %1467 = vmatpush1.bf16.msra.mxu0 0
      %1468 = vmatprep.mubr.bf16.mxu0 0
      %1469 = vmatmul.mubr.bf16.gmra.mrb[0].mxu0 %v1409
      %v1470 = vpop.f32.mrb[0].mxu0
      %v1471 = vadd.f32 0.0, %v1470
      %v1472 = vpop.f32.mrb[0].mxu0
      %v1473 = vpop.f32.mrb[0].mxu0
      %v1474 = vadd.f32 0.0, %v1473
      %v1475 = vpop.f32.mrb[0].mxu0
      %1476 = vmatprep.mubr.bf16.mxu0 0
      %1477 = vmatmul.mubr.bf16.gmra.mrb[0].mxu0 %v1412
      %v1478 = vpop.f32.mrb[0].mxu0
      %v1479 = vadd.f32 0.0, %v1478
      %v1480 = vpop.f32.mrb[0].mxu0
      %v1481 = vpop.f32.mrb[0].mxu0
      %v1482 = vadd.f32 0.0, %v1481
      %v1483 = vpop.f32.mrb[0].mxu0
      %1484 = vmatprep.mubr.bf16.mxu0 0
      %1485 = vmatmul.mubr.bf16.gmra.mrb[0].mxu0 %v1415
      %v1486 = vpop.f32.mrb[0].mxu0
      %v1487 = vadd.f32 0.0, %v1486
      %v1488 = vpop.f32.mrb[0].mxu0
      %v1489 = vpop.f32.mrb[0].mxu0
      %v1490 = vadd.f32 0.0, %v1489
      %v1491 = vpop.f32.mrb[0].mxu0
      %1492 = vmatprep.mubr.bf16.mxu0 0
      %1493 = vmatmul.mubr.bf16.gmra.mrb[0].mxu0 %v1418
      %v1494 = vpop.f32.mrb[0].mxu0
      %v1495 = vadd.f32 0.0, %v1494
      %v1496 = vpop.f32.mrb[0].mxu0
      %v1497 = vpop.f32.mrb[0].mxu0
      %v1498 = vadd.f32 0.0, %v1497
      %v1499 = vpop.f32.mrb[0].mxu0
      %1500 = vmatprep.mubr.bf16.mxu0 0
      %1501 = vmatmul.mubr.bf16.gmra.mrb[0].mxu0 %v1421
      %v1502 = vpop.f32.mrb[0].mxu0
      %v1503 = vadd.f32 0.0, %v1502
      %v1504 = vpop.f32.mrb[0].mxu0
      %v1505 = vpop.f32.mrb[0].mxu0
      %v1506 = vadd.f32 0.0, %v1505
      %v1507 = vpop.f32.mrb[0].mxu0
      %1508 = vmatprep.mubr.bf16.mxu0 0
      %1509 = vmatmul.mubr.bf16.gmra.mrb[0].mxu0 %v1424
      %v1510 = vpop.f32.mrb[0].mxu0
      %v1511 = vadd.f32 0.0, %v1510
      %v1512 = vpop.f32.mrb[0].mxu0
      %v1513 = vpop.f32.mrb[0].mxu0
      %v1514 = vadd.f32 0.0, %v1513
      %v1515 = vpop.f32.mrb[0].mxu0
      %1516 = vmatprep.mubr.bf16.mxu0 0
      %1517 = vmatmul.mubr.bf16.gmra.mrb[0].mxu0 %v1427
      %v1518 = vpop.f32.mrb[0].mxu0
      %v1519 = vadd.f32 0.0, %v1518
      %v1520 = vpop.f32.mrb[0].mxu0
      %v1521 = vpop.f32.mrb[0].mxu0
      %v1522 = vadd.f32 0.0, %v1521
      %v1523 = vpop.f32.mrb[0].mxu0
      %1524 = vmatprep.mubr.bf16.mxu0 0
      %1525 = vmatmul.mubr.bf16.gmra.mrb[0].mxu0 %v1430
      %v1526 = vpop.f32.mrb[0].mxu0
      %v1527 = vadd.f32 0.0, %v1526
      %v1528 = vpop.f32.mrb[0].mxu0
      %v1529 = vpop.f32.mrb[0].mxu0
      %v1530 = vadd.f32 0.0, %v1529
      %v1531 = vpop.f32.mrb[0].mxu0
      %1532 = vdwg.mxu0
      %v1534 = vsel %vm1407, %v1384, 0
      %v1537 = vsel %vm1407, %v1385, 0
      %v1540 = vsel %vm1407, %v1386, 0
      %v1543 = vsel %vm1407, %v1387, 0
      %v1546 = vsel %vm1407, %v1388, 0
      %v1549 = vsel %vm1407, %v1389, 0
      %v1552 = vsel %vm1407, %v1390, 0
      %v1555 = vsel %vm1407, %v1391, 0
      %v1558 = vsel %vm1432, %v1404, 0
      %1560 = vmatprep.subr.bf16.mxu0 0
      %1561 = vmatpush1.bf16.msra.mxu0 %v1558
      %1562 = vmatprep.subr.bf16.mxu0 0
      %1563 = vmatpush1.bf16.msra.mxu0 0
      %1564 = vmatprep.subr.bf16.mxu0 0
      %1565 = vmatpush1.bf16.msra.mxu0 0
      %1566 = vmatprep.subr.bf16.mxu0 0
      %1567 = vmatpush1.bf16.msra.mxu0 0
      %1568 = vmatprep.subr.bf16.mxu0 0
      %1569 = vmatpush1.bf16.msra.mxu0 0
      %1570 = vmatprep.subr.bf16.mxu0 0
      %1571 = vmatpush1.bf16.msra.mxu0 0
      %1572 = vmatprep.subr.bf16.mxu0 0
      %1573 = vmatpush1.bf16.msra.mxu0 0
      %1574 = vmatprep.subr.bf16.mxu0 0
      %1575 = vmatpush1.bf16.msra.mxu0 0
      %1576 = vmatprep.subr.bf16.mxu0 0
      %1577 = vmatpush1.bf16.msra.mxu0 0
      %1578 = vmatprep.subr.bf16.mxu0 0
      %1579 = vmatpush1.bf16.msra.mxu0 0
      %1580 = vmatprep.subr.bf16.mxu0 0
      %1581 = vmatpush1.bf16.msra.mxu0 0
      %1582 = vmatprep.subr.bf16.mxu0 0
      %1583 = vmatpush1.bf16.msra.mxu0 0
      %1584 = vmatprep.subr.bf16.mxu0 0
      %1585 = vmatpush1.bf16.msra.mxu0 0
      %1586 = vmatprep.subr.bf16.mxu0 0
      %1587 = vmatpush1.bf16.msra.mxu0 0
      %1588 = vmatprep.subr.bf16.mxu0 0
      %1589 = vmatpush1.bf16.msra.mxu0 0
      %1590 = vmatprep.subr.bf16.mxu0 0
      %1591 = vmatpush1.bf16.msra.mxu0 0
      %1592 = vmatprep.mubr.bf16.mxu0 0
      %1593 = vmatmul.mubr.bf16.gmra.mrb[0].mxu0 %v1534
      %v1594 = vpop.f32.mrb[0].mxu0
      %v1595 = vadd.f32 %v1471, %v1594
      %v1596 = vpop.f32.mrb[0].mxu0
      %v1597 = vpop.f32.mrb[0].mxu0
      %v1598 = vadd.f32 %v1474, %v1597
      %v1599 = vpop.f32.mrb[0].mxu0
      %1600 = vmatprep.mubr.bf16.mxu0 0
      %1601 = vmatmul.mubr.bf16.gmra.mrb[0].mxu0 %v1537
      %v1602 = vpop.f32.mrb[0].mxu0
      %v1603 = vadd.f32 %v1479, %v1602
      %v1604 = vpop.f32.mrb[0].mxu0
      %v1605 = vpop.f32.mrb[0].mxu0
      %v1606 = vadd.f32 %v1482, %v1605
      %v1607 = vpop.f32.mrb[0].mxu0
      %1608 = vmatprep.mubr.bf16.mxu0 0
      %1609 = vmatmul.mubr.bf16.gmra.mrb[0].mxu0 %v1540
      %v1610 = vpop.f32.mrb[0].mxu0
      %v1611 = vadd.f32 %v1487, %v1610
      %v1612 = vpop.f32.mrb[0].mxu0
      %v1613 = vpop.f32.mrb[0].mxu0
      %v1614 = vadd.f32 %v1490, %v1613
      %v1615 = vpop.f32.mrb[0].mxu0
      %1616 = vmatprep.mubr.bf16.mxu0 0
      %1617 = vmatmul.mubr.bf16.gmra.mrb[0].mxu0 %v1543
      %v1618 = vpop.f32.mrb[0].mxu0
      %v1619 = vadd.f32 %v1495, %v1618
      %v1620 = vpop.f32.mrb[0].mxu0
      %v1621 = vpop.f32.mrb[0].mxu0
      %v1622 = vadd.f32 %v1498, %v1621
      %v1623 = vpop.f32.mrb[0].mxu0
      %1624 = vmatprep.mubr.bf16.mxu0 0
      %1625 = vmatmul.mubr.bf16.gmra.mrb[0].mxu0 %v1546
      %v1626 = vpop.f32.mrb[0].mxu0
      %v1627 = vadd.f32 %v1503, %v1626
      %v1628 = vpop.f32.mrb[0].mxu0
      %v1629 = vpop.f32.mrb[0].mxu0
      %v1630 = vadd.f32 %v1506, %v1629
      %v1631 = vpop.f32.mrb[0].mxu0
      %1632 = vmatprep.mubr.bf16.mxu0 0
      %1633 = vmatmul.mubr.bf16.gmra.mrb[0].mxu0 %v1549
      %v1634 = vpop.f32.mrb[0].mxu0
      %v1635 = vadd.f32 %v1511, %v1634
      %v1636 = vpop.f32.mrb[0].mxu0
      %v1637 = vpop.f32.mrb[0].mxu0
      %v1638 = vadd.f32 %v1514, %v1637
      %v1639 = vpop.f32.mrb[0].mxu0
      %1640 = vmatprep.mubr.bf16.mxu0 0
      %1641 = vmatmul.mubr.bf16.gmra.mrb[0].mxu0 %v1552
      %v1642 = vpop.f32.mrb[0].mxu0
      %v1643 = vadd.f32 %v1519, %v1642
      %v1644 = vpop.f32.mrb[0].mxu0
      %v1645 = vpop.f32.mrb[0].mxu0
      %v1646 = vadd.f32 %v1522, %v1645
      %v1647 = vpop.f32.mrb[0].mxu0
      %1648 = vmatprep.mubr.bf16.mxu0 0
      %1649 = vmatmul.mubr.bf16.gmra.mrb[0].mxu0 %v1555
      %v1650 = vpop.f32.mrb[0].mxu0
      %v1651 = vadd.f32 %v1527, %v1650
      %v1652 = vpop.f32.mrb[0].mxu0
      %v1653 = vpop.f32.mrb[0].mxu0
      %v1654 = vadd.f32 %v1530, %v1653
      %v1655 = vpop.f32.mrb[0].mxu0
      %1656 = vdwg.mxu0
      %s1657 = scalar_lea.vmem %s5, 4
      %v1658 = vld [vmem:[%s1657] sm:$0x3]
      %v1660 = vsel %vm1407, %v1394, 0
      %v1663 = vsel %vm1407, %v1395, 0
      %v1666 = vsel %vm1407, %v1396, 0
      %v1669 = vsel %vm1407, %v1397, 0
      %v1672 = vsel %vm1407, %v1398, 0
      %v1675 = vsel %vm1407, %v1399, 0
      %v1678 = vsel %vm1407, %v1400, 0
      %v1681 = vsel %vm1407, %v1401, 0
      %v1684 = vsel %vm1432, %v1658, 0
      %1686 = vmatprep.subr.bf16.mxu0 0
      %1687 = vmatpush1.bf16.msra.mxu0 %v1684
      %1688 = vmatprep.subr.bf16.mxu0 0
      %1689 = vmatpush1.bf16.msra.mxu0 0
      %1690 = vmatprep.subr.bf16.mxu0 0
      %1691 = vmatpush1.bf16.msra.mxu0 0
      %1692 = vmatprep.subr.bf16.mxu0 0
      %1693 = vmatpush1.bf16.msra.mxu0 0
      %1694 = vmatprep.subr.bf16.mxu0 0
      %1695 = vmatpush1.bf16.msra.mxu0 0
      %1696 = vmatprep.subr.bf16.mxu0 0
      %1697 = vmatpush1.bf16.msra.mxu0 0
      %1698 = vmatprep.subr.bf16.mxu0 0
      %1699 = vmatpush1.bf16.msra.mxu0 0
      %1700 = vmatprep.subr.bf16.mxu0 0
      %1701 = vmatpush1.bf16.msra.mxu0 0
      %1702 = vmatprep.subr.bf16.mxu0 0
      %1703 = vmatpush1.bf16.msra.mxu0 0
      %1704 = vmatprep.subr.bf16.mxu0 0
      %1705 = vmatpush1.bf16.msra.mxu0 0
      %1706 = vmatprep.subr.bf16.mxu0 0
      %1707 = vmatpush1.bf16.msra.mxu0 0
      %1708 = vmatprep.subr.bf16.mxu0 0
      %1709 = vmatpush1.bf16.msra.mxu0 0
      %1710 = vmatprep.subr.bf16.mxu0 0
      %1711 = vmatpush1.bf16.msra.mxu0 0
      %1712 = vmatprep.subr.bf16.mxu0 0
      %1713 = vmatpush1.bf16.msra.mxu0 0
      %1714 = vmatprep.subr.bf16.mxu0 0
      %1715 = vmatpush1.bf16.msra.mxu0 0
      %1716 = vmatprep.subr.bf16.mxu0 0
      %1717 = vmatpush1.bf16.msra.mxu0 0
      %1718 = vmatprep.mubr.bf16.mxu0 0
      %1719 = vmatmul.mubr.bf16.gmra.mrb[0].mxu0 %v1660
      %v1720 = vpop.f32.mrb[0].mxu0
      %v1721 = vadd.f32 0.0, %v1720
      %v1722 = vpop.f32.mrb[0].mxu0
      %v1723 = vpop.f32.mrb[0].mxu0
      %v1724 = vadd.f32 0.0, %v1723
      %v1725 = vpop.f32.mrb[0].mxu0
      %1726 = vmatprep.mubr.bf16.mxu0 0
      %1727 = vmatmul.mubr.bf16.gmra.mrb[0].mxu0 %v1663
      %v1728 = vpop.f32.mrb[0].mxu0
      %v1729 = vadd.f32 0.0, %v1728
      %v1730 = vpop.f32.mrb[0].mxu0
      %v1731 = vpop.f32.mrb[0].mxu0
      %v1732 = vadd.f32 0.0, %v1731
      %v1733 = vpop.f32.mrb[0].mxu0
      %1734 = vmatprep.mubr.bf16.mxu0 0
      %1735 = vmatmul.mubr.bf16.gmra.mrb[0].mxu0 %v1666
      %v1736 = vpop.f32.mrb[0].mxu0
      %v1737 = vadd.f32 0.0, %v1736
      %v1738 = vpop.f32.mrb[0].mxu0
      %v1739 = vpop.f32.mrb[0].mxu0
      %v1740 = vadd.f32 0.0, %v1739
      %v1741 = vpop.f32.mrb[0].mxu0
      %1742 = vmatprep.mubr.bf16.mxu0 0
      %1743 = vmatmul.mubr.bf16.gmra.mrb[0].mxu0 %v1669
      %v1744 = vpop.f32.mrb[0].mxu0
      %v1745 = vadd.f32 0.0, %v1744
      %v1746 = vpop.f32.mrb[0].mxu0
      %v1747 = vpop.f32.mrb[0].mxu0
      %v1748 = vadd.f32 0.0, %v1747
      %v1749 = vpop.f32.mrb[0].mxu0
      %1750 = vmatprep.mubr.bf16.mxu0 0
      %1751 = vmatmul.mubr.bf16.gmra.mrb[0].mxu0 %v1672
      %v1752 = vpop.f32.mrb[0].mxu0
      %v1753 = vadd.f32 0.0, %v1752
      %v1754 = vpop.f32.mrb[0].mxu0
      %v1755 = vpop.f32.mrb[0].mxu0
      %v1756 = vadd.f32 0.0, %v1755
      %v1757 = vpop.f32.mrb[0].mxu0
      %1758 = vmatprep.mubr.bf16.mxu0 0
      %1759 = vmatmul.mubr.bf16.gmra.mrb[0].mxu0 %v1675
      %v1760 = vpop.f32.mrb[0].mxu0
      %v1761 = vadd.f32 0.0, %v1760
      %v1762 = vpop.f32.mrb[0].mxu0
      %v1763 = vpop.f32.mrb[0].mxu0
      %v1764 = vadd.f32 0.0, %v1763
      %v1765 = vpop.f32.mrb[0].mxu0
      %1766 = vmatprep.mubr.bf16.mxu0 0
      %1767 = vmatmul.mubr.bf16.gmra.mrb[0].mxu0 %v1678
      %v1768 = vpop.f32.mrb[0].mxu0
      %v1769 = vadd.f32 0.0, %v1768
      %v1770 = vpop.f32.mrb[0].mxu0
      %v1771 = vpop.f32.mrb[0].mxu0
      %v1772 = vadd.f32 0.0, %v1771
      %v1773 = vpop.f32.mrb[0].mxu0
      %1774 = vmatprep.mubr.bf16.mxu0 0
      %1775 = vmatmul.mubr.bf16.gmra.mrb[0].mxu0 %v1681
      %v1776 = vpop.f32.mrb[0].mxu0
      %v1777 = vadd.f32 0.0, %v1776
      %v1778 = vpop.f32.mrb[0].mxu0
      %v1779 = vpop.f32.mrb[0].mxu0
      %v1780 = vadd.f32 0.0, %v1779
      %v1781 = vpop.f32.mrb[0].mxu0
      %1782 = vdwg.mxu0
      %v1783 = vadd.f32 %v1595, %v1721
      %v1784 = vadd.f32 %v1598, %v1724
      %v1785 = vadd.f32 %v1603, %v1729
      %v1786 = vadd.f32 %v1606, %v1732
      %v1787 = vadd.f32 %v1611, %v1737
      %v1788 = vadd.f32 %v1614, %v1740
      %v1789 = vadd.f32 %v1619, %v1745
      %v1790 = vadd.f32 %v1622, %v1748
      %v1791 = vadd.f32 %v1627, %v1753
      %v1792 = vadd.f32 %v1630, %v1756
      %v1793 = vadd.f32 %v1635, %v1761
      %v1794 = vadd.f32 %v1638, %v1764
      %v1795 = vadd.f32 %v1643, %v1769
      %v1796 = vadd.f32 %v1646, %v1772
      %v1797 = vadd.f32 %v1651, %v1777
      %v1798 = vadd.f32 %v1654, %v1780
      %s1799 = scalar_lea.vmem %s5, 6
      %v1800 = vld [vmem:[%s1799] sm:$0x3]
      %v1802 = vsel %vm1407, %v1392, 0
      %v1805 = vsel %vm1432, %v1800, 0
      %1807 = vmatprep.subr.bf16.mxu0 0
      %1808 = vmatpush1.bf16.msra.mxu0 %v1805
      %1809 = vmatprep.subr.bf16.mxu0 0
      %1810 = vmatpush1.bf16.msra.mxu0 0
      %1811 = vmatprep.subr.bf16.mxu0 0
      %1812 = vmatpush1.bf16.msra.mxu0 0
      %1813 = vmatprep.subr.bf16.mxu0 0
      %1814 = vmatpush1.bf16.msra.mxu0 0
      %1815 = vmatprep.subr.bf16.mxu0 0
      %1816 = vmatpush1.bf16.msra.mxu0 0
      %1817 = vmatprep.subr.bf16.mxu0 0
      %1818 = vmatpush1.bf16.msra.mxu0 0
      %1819 = vmatprep.subr.bf16.mxu0 0
      %1820 = vmatpush1.bf16.msra.mxu0 0
      %1821 = vmatprep.subr.bf16.mxu0 0
      %1822 = vmatpush1.bf16.msra.mxu0 0
      %1823 = vmatprep.subr.bf16.mxu0 0
      %1824 = vmatpush1.bf16.msra.mxu0 0
      %1825 = vmatprep.subr.bf16.mxu0 0
      %1826 = vmatpush1.bf16.msra.mxu0 0
      %1827 = vmatprep.subr.bf16.mxu0 0
      %1828 = vmatpush1.bf16.msra.mxu0 0
      %1829 = vmatprep.subr.bf16.mxu0 0
      %1830 = vmatpush1.bf16.msra.mxu0 0
      %1831 = vmatprep.subr.bf16.mxu0 0
      %1832 = vmatpush1.bf16.msra.mxu0 0
      %1833 = vmatprep.subr.bf16.mxu0 0
      %1834 = vmatpush1.bf16.msra.mxu0 0
      %1835 = vmatprep.subr.bf16.mxu0 0
      %1836 = vmatpush1.bf16.msra.mxu0 0
      %1837 = vmatprep.subr.bf16.mxu0 0
      %1838 = vmatpush1.bf16.msra.mxu0 0
      %1839 = vmatprep.mubr.bf16.mxu0 0
      %1840 = vmatmul.mubr.bf16.gmra.mrb[0].mxu0 %v1537
      %v1841 = vpop.f32.mrb[0].mxu0
      %v1842 = vadd.f32 0.0, %v1841
      %v1843 = vpop.f32.mrb[0].mxu0
      %v1844 = vpop.f32.mrb[0].mxu0
      %v1845 = vadd.f32 0.0, %v1844
      %v1846 = vpop.f32.mrb[0].mxu0
      %1847 = vmatprep.mubr.bf16.mxu0 0
      %1848 = vmatmul.mubr.bf16.gmra.mrb[0].mxu0 %v1540
      %v1849 = vpop.f32.mrb[0].mxu0
      %v1850 = vadd.f32 0.0, %v1849
      %v1851 = vpop.f32.mrb[0].mxu0
      %v1852 = vpop.f32.mrb[0].mxu0
      %v1853 = vadd.f32 0.0, %v1852
      %v1854 = vpop.f32.mrb[0].mxu0
      %1855 = vmatprep.mubr.bf16.mxu0 0
      %1856 = vmatmul.mubr.bf16.gmra.mrb[0].mxu0 %v1543
      %v1857 = vpop.f32.mrb[0].mxu0
      %v1858 = vadd.f32 0.0, %v1857
      %v1859 = vpop.f32.mrb[0].mxu0
      %v1860 = vpop.f32.mrb[0].mxu0
      %v1861 = vadd.f32 0.0, %v1860
      %v1862 = vpop.f32.mrb[0].mxu0
      %1863 = vmatprep.mubr.bf16.mxu0 0
      %1864 = vmatmul.mubr.bf16.gmra.mrb[0].mxu0 %v1546
      %v1865 = vpop.f32.mrb[0].mxu0
      %v1866 = vadd.f32 0.0, %v1865
      %v1867 = vpop.f32.mrb[0].mxu0
      %v1868 = vpop.f32.mrb[0].mxu0
      %v1869 = vadd.f32 0.0, %v1868
      %v1870 = vpop.f32.mrb[0].mxu0
      %1871 = vmatprep.mubr.bf16.mxu0 0
      %1872 = vmatmul.mubr.bf16.gmra.mrb[0].mxu0 %v1549
      %v1873 = vpop.f32.mrb[0].mxu0
      %v1874 = vadd.f32 0.0, %v1873
      %v1875 = vpop.f32.mrb[0].mxu0
      %v1876 = vpop.f32.mrb[0].mxu0
      %v1877 = vadd.f32 0.0, %v1876
      %v1878 = vpop.f32.mrb[0].mxu0
      %1879 = vmatprep.mubr.bf16.mxu0 0
      %1880 = vmatmul.mubr.bf16.gmra.mrb[0].mxu0 %v1552
      %v1881 = vpop.f32.mrb[0].mxu0
      %v1882 = vadd.f32 0.0, %v1881
      %v1883 = vpop.f32.mrb[0].mxu0
      %v1884 = vpop.f32.mrb[0].mxu0
      %v1885 = vadd.f32 0.0, %v1884
      %v1886 = vpop.f32.mrb[0].mxu0
      %1887 = vmatprep.mubr.bf16.mxu0 0
      %1888 = vmatmul.mubr.bf16.gmra.mrb[0].mxu0 %v1555
      %v1889 = vpop.f32.mrb[0].mxu0
      %v1890 = vadd.f32 0.0, %v1889
      %v1891 = vpop.f32.mrb[0].mxu0
      %v1892 = vpop.f32.mrb[0].mxu0
      %v1893 = vadd.f32 0.0, %v1892
      %v1894 = vpop.f32.mrb[0].mxu0
      %1895 = vmatprep.mubr.bf16.mxu0 0
      %1896 = vmatmul.mubr.bf16.gmra.mrb[0].mxu0 %v1802
      %v1897 = vpop.f32.mrb[0].mxu0
      %v1898 = vadd.f32 0.0, %v1897
      %v1899 = vpop.f32.mrb[0].mxu0
      %v1900 = vpop.f32.mrb[0].mxu0
      %v1901 = vadd.f32 0.0, %v1900
      %v1902 = vpop.f32.mrb[0].mxu0
      %1903 = vdwg.mxu0
      %v1904 = vadd.f32 %v1783, %v1842
      %v1905 = vadd.f32 %v1784, %v1845
      %v1906 = vadd.f32 %v1785, %v1850
      %v1907 = vadd.f32 %v1786, %v1853
      %v1908 = vadd.f32 %v1787, %v1858
      %v1909 = vadd.f32 %v1788, %v1861
      %v1910 = vadd.f32 %v1789, %v1866
      %v1911 = vadd.f32 %v1790, %v1869
      %v1912 = vadd.f32 %v1791, %v1874
      %v1913 = vadd.f32 %v1792, %v1877
      %v1914 = vadd.f32 %v1793, %v1882
      %v1915 = vadd.f32 %v1794, %v1885
      %v1916 = vadd.f32 %v1795, %v1890
      %v1917 = vadd.f32 %v1796, %v1893
      %v1918 = vadd.f32 %v1797, %v1898
      %v1919 = vadd.f32 %v1798, %v1901
      %s1920 = scalar_lea.vmem %s5, 8
      %v1921 = vld [vmem:[%s1920] sm:$0x3]
      %v1923 = vsel %vm1407, %v1382, 0
      %v1926 = vsel %vm1432, %v1921, 0
      %1928 = vmatprep.subr.bf16.mxu0 0
      %1929 = vmatpush1.bf16.msra.mxu0 %v1926
      %1930 = vmatprep.subr.bf16.mxu0 0
      %1931 = vmatpush1.bf16.msra.mxu0 0
      %1932 = vmatprep.subr.bf16.mxu0 0
      %1933 = vmatpush1.bf16.msra.mxu0 0
      %1934 = vmatprep.subr.bf16.mxu0 0
      %1935 = vmatpush1.bf16.msra.mxu0 0
      %1936 = vmatprep.subr.bf16.mxu0 0
      %1937 = vmatpush1.bf16.msra.mxu0 0
      %1938 = vmatprep.subr.bf16.mxu0 0
      %1939 = vmatpush1.bf16.msra.mxu0 0
      %1940 = vmatprep.subr.bf16.mxu0 0
      %1941 = vmatpush1.bf16.msra.mxu0 0
      %1942 = vmatprep.subr.bf16.mxu0 0
      %1943 = vmatpush1.bf16.msra.mxu0 0
      %1944 = vmatprep.subr.bf16.mxu0 0
      %1945 = vmatpush1.bf16.msra.mxu0 0
      %1946 = vmatprep.subr.bf16.mxu0 0
      %1947 = vmatpush1.bf16.msra.mxu0 0
      %1948 = vmatprep.subr.bf16.mxu0 0
      %1949 = vmatpush1.bf16.msra.mxu0 0
      %1950 = vmatprep.subr.bf16.mxu0 0
      %1951 = vmatpush1.bf16.msra.mxu0 0
      %1952 = vmatprep.subr.bf16.mxu0 0
      %1953 = vmatpush1.bf16.msra.mxu0 0
      %1954 = vmatprep.subr.bf16.mxu0 0
      %1955 = vmatpush1.bf16.msra.mxu0 0
      %1956 = vmatprep.subr.bf16.mxu0 0
      %1957 = vmatpush1.bf16.msra.mxu0 0
      %1958 = vmatprep.subr.bf16.mxu0 0
      %1959 = vmatpush1.bf16.msra.mxu0 0
      %1960 = vmatprep.mubr.bf16.mxu0 0
      %1961 = vmatmul.mubr.bf16.gmra.mrb[0].mxu0 %v1412
      %v1962 = vpop.f32.mrb[0].mxu0
      %v1963 = vadd.f32 0.0, %v1962
      %v1964 = vpop.f32.mrb[0].mxu0
      %v1965 = vpop.f32.mrb[0].mxu0
      %v1966 = vadd.f32 0.0, %v1965
      %v1967 = vpop.f32.mrb[0].mxu0
      %1968 = vmatprep.mubr.bf16.mxu0 0
      %1969 = vmatmul.mubr.bf16.gmra.mrb[0].mxu0 %v1415
      %v1970 = vpop.f32.mrb[0].mxu0
      %v1971 = vadd.f32 0.0, %v1970
      %v1972 = vpop.f32.mrb[0].mxu0
      %v1973 = vpop.f32.mrb[0].mxu0
      %v1974 = vadd.f32 0.0, %v1973
      %v1975 = vpop.f32.mrb[0].mxu0
      %1976 = vmatprep.mubr.bf16.mxu0 0
      %1977 = vmatmul.mubr.bf16.gmra.mrb[0].mxu0 %v1418
      %v1978 = vpop.f32.mrb[0].mxu0
      %v1979 = vadd.f32 0.0, %v1978
      %v1980 = vpop.f32.mrb[0].mxu0
      %v1981 = vpop.f32.mrb[0].mxu0
      %v1982 = vadd.f32 0.0, %v1981
      %v1983 = vpop.f32.mrb[0].mxu0
      %1984 = vmatprep.mubr.bf16.mxu0 0
      %1985 = vmatmul.mubr.bf16.gmra.mrb[0].mxu0 %v1421
      %v1986 = vpop.f32.mrb[0].mxu0
      %v1987 = vadd.f32 0.0, %v1986
      %v1988 = vpop.f32.mrb[0].mxu0
      %v1989 = vpop.f32.mrb[0].mxu0
      %v1990 = vadd.f32 0.0, %v1989
      %v1991 = vpop.f32.mrb[0].mxu0
      %1992 = vmatprep.mubr.bf16.mxu0 0
      %1993 = vmatmul.mubr.bf16.gmra.mrb[0].mxu0 %v1424
      %v1994 = vpop.f32.mrb[0].mxu0
      %v1995 = vadd.f32 0.0, %v1994
      %v1996 = vpop.f32.mrb[0].mxu0
      %v1997 = vpop.f32.mrb[0].mxu0
      %v1998 = vadd.f32 0.0, %v1997
      %v1999 = vpop.f32.mrb[0].mxu0
      %2000 = vmatprep.mubr.bf16.mxu0 0
      %2001 = vmatmul.mubr.bf16.gmra.mrb[0].mxu0 %v1427
      %v2002 = vpop.f32.mrb[0].mxu0
      %v2003 = vadd.f32 0.0, %v2002
      %v2004 = vpop.f32.mrb[0].mxu0
      %v2005 = vpop.f32.mrb[0].mxu0
      %v2006 = vadd.f32 0.0, %v2005
      %v2007 = vpop.f32.mrb[0].mxu0
      %2008 = vmatprep.mubr.bf16.mxu0 0
      %2009 = vmatmul.mubr.bf16.gmra.mrb[0].mxu0 %v1430
      %v2010 = vpop.f32.mrb[0].mxu0
      %v2011 = vadd.f32 0.0, %v2010
      %v2012 = vpop.f32.mrb[0].mxu0
      %v2013 = vpop.f32.mrb[0].mxu0
      %v2014 = vadd.f32 0.0, %v2013
      %v2015 = vpop.f32.mrb[0].mxu0
      %2016 = vmatprep.mubr.bf16.mxu0 0
      %2017 = vmatmul.mubr.bf16.gmra.mrb[0].mxu0 %v1923
      %v2018 = vpop.f32.mrb[0].mxu0
      %v2019 = vadd.f32 0.0, %v2018
      %v2020 = vpop.f32.mrb[0].mxu0
      %v2021 = vpop.f32.mrb[0].mxu0
      %v2022 = vadd.f32 0.0, %v2021
      %v2023 = vpop.f32.mrb[0].mxu0
      %2024 = vdwg.mxu0
      %v2025 = vadd.f32 %v1904, %v1963
      %v2026 = vadd.f32 %v1905, %v1966
      %v2027 = vadd.f32 %v1906, %v1971
      %v2028 = vadd.f32 %v1907, %v1974
      %v2029 = vadd.f32 %v1908, %v1979
      %v2030 = vadd.f32 %v1909, %v1982
      %v2031 = vadd.f32 %v1910, %v1987
      %v2032 = vadd.f32 %v1911, %v1990
      %v2033 = vadd.f32 %v1912, %v1995
      %v2034 = vadd.f32 %v1913, %v1998
      %v2035 = vadd.f32 %v1914, %v2003
      %v2036 = vadd.f32 %v1915, %v2006
      %v2037 = vadd.f32 %v1916, %v2011
      %v2038 = vadd.f32 %v1917, %v2014
      %v2039 = vadd.f32 %v1918, %v2019
      %v2040 = vadd.f32 %v1919, %v2022
      %s2041 = scalar_lea.vmem %s5, 10
      %v2042 = vld [vmem:[%s2041] sm:$0x3]
      %v2044 = vsel %vm1407, %v1402, 0
      %v2047 = vsel %vm1432, %v2042, 0
      %2049 = vmatprep.subr.bf16.mxu0 0
      %2050 = vmatpush1.bf16.msra.mxu0 %v2047
      %2051 = vmatprep.subr.bf16.mxu0 0
      %2052 = vmatpush1.bf16.msra.mxu0 0
      %2053 = vmatprep.subr.bf16.mxu0 0
      %2054 = vmatpush1.bf16.msra.mxu0 0
      %2055 = vmatprep.subr.bf16.mxu0 0
      %2056 = vmatpush1.bf16.msra.mxu0 0
      %2057 = vmatprep.subr.bf16.mxu0 0
      %2058 = vmatpush1.bf16.msra.mxu0 0
      %2059 = vmatprep.subr.bf16.mxu0 0
      %2060 = vmatpush1.bf16.msra.mxu0 0
      %2061 = vmatprep.subr.bf16.mxu0 0
      %2062 = vmatpush1.bf16.msra.mxu0 0
      %2063 = vmatprep.subr.bf16.mxu0 0
      %2064 = vmatpush1.bf16.msra.mxu0 0
      %2065 = vmatprep.subr.bf16.mxu0 0
      %2066 = vmatpush1.bf16.msra.mxu0 0
      %2067 = vmatprep.subr.bf16.mxu0 0
      %2068 = vmatpush1.bf16.msra.mxu0 0
      %2069 = vmatprep.subr.bf16.mxu0 0
      %2070 = vmatpush1.bf16.msra.mxu0 0
      %2071 = vmatprep.subr.bf16.mxu0 0
      %2072 = vmatpush1.bf16.msra.mxu0 0
      %2073 = vmatprep.subr.bf16.mxu0 0
      %2074 = vmatpush1.bf16.msra.mxu0 0
      %2075 = vmatprep.subr.bf16.mxu0 0
      %2076 = vmatpush1.bf16.msra.mxu0 0
      %2077 = vmatprep.subr.bf16.mxu0 0
      %2078 = vmatpush1.bf16.msra.mxu0 0
      %2079 = vmatprep.subr.bf16.mxu0 0
      %2080 = vmatpush1.bf16.msra.mxu0 0
      %2081 = vmatprep.mubr.bf16.mxu0 0
      %2082 = vmatmul.mubr.bf16.gmra.mrb[0].mxu0 %v1663
      %v2083 = vpop.f32.mrb[0].mxu0
      %v2084 = vadd.f32 0.0, %v2083
      %v2085 = vpop.f32.mrb[0].mxu0
      %v2086 = vpop.f32.mrb[0].mxu0
      %v2087 = vadd.f32 0.0, %v2086
      %v2088 = vpop.f32.mrb[0].mxu0
      %2089 = vmatprep.mubr.bf16.mxu0 0
      %2090 = vmatmul.mubr.bf16.gmra.mrb[0].mxu0 %v1666
      %v2091 = vpop.f32.mrb[0].mxu0
      %v2092 = vadd.f32 0.0, %v2091
      %v2093 = vpop.f32.mrb[0].mxu0
      %v2094 = vpop.f32.mrb[0].mxu0
      %v2095 = vadd.f32 0.0, %v2094
      %v2096 = vpop.f32.mrb[0].mxu0
      %2097 = vmatprep.mubr.bf16.mxu0 0
      %2098 = vmatmul.mubr.bf16.gmra.mrb[0].mxu0 %v1669
      %v2099 = vpop.f32.mrb[0].mxu0
      %v2100 = vadd.f32 0.0, %v2099
      %v2101 = vpop.f32.mrb[0].mxu0
      %v2102 = vpop.f32.mrb[0].mxu0
      %v2103 = vadd.f32 0.0, %v2102
      %v2104 = vpop.f32.mrb[0].mxu0
      %2105 = vmatprep.mubr.bf16.mxu0 0
      %2106 = vmatmul.mubr.bf16.gmra.mrb[0].mxu0 %v1672
      %v2107 = vpop.f32.mrb[0].mxu0
      %v2108 = vadd.f32 0.0, %v2107
      %v2109 = vpop.f32.mrb[0].mxu0
      %v2110 = vpop.f32.mrb[0].mxu0
      %v2111 = vadd.f32 0.0, %v2110
      %v2112 = vpop.f32.mrb[0].mxu0
      %2113 = vmatprep.mubr.bf16.mxu0 0
      %2114 = vmatmul.mubr.bf16.gmra.mrb[0].mxu0 %v1675
      %v2115 = vpop.f32.mrb[0].mxu0
      %v2116 = vadd.f32 0.0, %v2115
      %v2117 = vpop.f32.mrb[0].mxu0
      %v2118 = vpop.f32.mrb[0].mxu0
      %v2119 = vadd.f32 0.0, %v2118
      %v2120 = vpop.f32.mrb[0].mxu0
      %2121 = vmatprep.mubr.bf16.mxu0 0
      %2122 = vmatmul.mubr.bf16.gmra.mrb[0].mxu0 %v1678
      %v2123 = vpop.f32.mrb[0].mxu0
      %v2124 = vadd.f32 0.0, %v2123
      %v2125 = vpop.f32.mrb[0].mxu0
      %v2126 = vpop.f32.mrb[0].mxu0
      %v2127 = vadd.f32 0.0, %v2126
      %v2128 = vpop.f32.mrb[0].mxu0
      %2129 = vmatprep.mubr.bf16.mxu0 0
      %2130 = vmatmul.mubr.bf16.gmra.mrb[0].mxu0 %v1681
      %v2131 = vpop.f32.mrb[0].mxu0
      %v2132 = vadd.f32 0.0, %v2131
      %v2133 = vpop.f32.mrb[0].mxu0
      %v2134 = vpop.f32.mrb[0].mxu0
      %v2135 = vadd.f32 0.0, %v2134
      %v2136 = vpop.f32.mrb[0].mxu0
      %2137 = vmatprep.mubr.bf16.mxu0 0
      %2138 = vmatmul.mubr.bf16.gmra.mrb[0].mxu0 %v2044
      %v2139 = vpop.f32.mrb[0].mxu0
      %v2140 = vadd.f32 0.0, %v2139
      %v2141 = vpop.f32.mrb[0].mxu0
      %v2142 = vpop.f32.mrb[0].mxu0
      %v2143 = vadd.f32 0.0, %v2142
      %v2144 = vpop.f32.mrb[0].mxu0
      %2145 = vdwg.mxu0
      %v2146 = vadd.f32 %v2025, %v2084
      %v2147 = vadd.f32 %v2026, %v2087
      %v2148 = vadd.f32 %v2027, %v2092
      %v2149 = vadd.f32 %v2028, %v2095
      %v2150 = vadd.f32 %v2029, %v2100
      %v2151 = vadd.f32 %v2030, %v2103
      %v2152 = vadd.f32 %v2031, %v2108
      %v2153 = vadd.f32 %v2032, %v2111
      %v2154 = vadd.f32 %v2033, %v2116
      %v2155 = vadd.f32 %v2034, %v2119
      %v2156 = vadd.f32 %v2035, %v2124
      %v2157 = vadd.f32 %v2036, %v2127
      %v2158 = vadd.f32 %v2037, %v2132
      %v2159 = vadd.f32 %v2038, %v2135
      %v2160 = vadd.f32 %v2039, %v2140
      %v2161 = vadd.f32 %v2040, %v2143
      %s2162 = scalar_lea.vmem %s5, 12
      %v2163 = vld [vmem:[%s2162] sm:$0x3]
      %v2165 = vsel %vm1407, %v1393, 0
      %v2168 = vsel %vm1432, %v2163, 0
      %2170 = vmatprep.subr.bf16.mxu0 0
      %2171 = vmatpush1.bf16.msra.mxu0 %v2168
      %2172 = vmatprep.subr.bf16.mxu0 0
      %2173 = vmatpush1.bf16.msra.mxu0 0
      %2174 = vmatprep.subr.bf16.mxu0 0
      %2175 = vmatpush1.bf16.msra.mxu0 0
      %2176 = vmatprep.subr.bf16.mxu0 0
      %2177 = vmatpush1.bf16.msra.mxu0 0
      %2178 = vmatprep.subr.bf16.mxu0 0
      %2179 = vmatpush1.bf16.msra.mxu0 0
      %2180 = vmatprep.subr.bf16.mxu0 0
      %2181 = vmatpush1.bf16.msra.mxu0 0
      %2182 = vmatprep.subr.bf16.mxu0 0
      %2183 = vmatpush1.bf16.msra.mxu0 0
      %2184 = vmatprep.subr.bf16.mxu0 0
      %2185 = vmatpush1.bf16.msra.mxu0 0
      %2186 = vmatprep.subr.bf16.mxu0 0
      %2187 = vmatpush1.bf16.msra.mxu0 0
      %2188 = vmatprep.subr.bf16.mxu0 0
      %2189 = vmatpush1.bf16.msra.mxu0 0
      %2190 = vmatprep.subr.bf16.mxu0 0
      %2191 = vmatpush1.bf16.msra.mxu0 0
      %2192 = vmatprep.subr.bf16.mxu0 0
      %2193 = vmatpush1.bf16.msra.mxu0 0
      %2194 = vmatprep.subr.bf16.mxu0 0
      %2195 = vmatpush1.bf16.msra.mxu0 0
      %2196 = vmatprep.subr.bf16.mxu0 0
      %2197 = vmatpush1.bf16.msra.mxu0 0
      %2198 = vmatprep.subr.bf16.mxu0 0
      %2199 = vmatpush1.bf16.msra.mxu0 0
      %2200 = vmatprep.subr.bf16.mxu0 0
      %2201 = vmatpush1.bf16.msra.mxu0 0
      %2202 = vmatprep.mubr.bf16.mxu0 0
      %2203 = vmatmul.mubr.bf16.gmra.mrb[0].mxu0 %v1540
      %v2204 = vpop.f32.mrb[0].mxu0
      %v2205 = vadd.f32 0.0, %v2204
      %v2206 = vpop.f32.mrb[0].mxu0
      %v2207 = vpop.f32.mrb[0].mxu0
      %v2208 = vadd.f32 0.0, %v2207
      %v2209 = vpop.f32.mrb[0].mxu0
      %2210 = vmatprep.mubr.bf16.mxu0 0
      %2211 = vmatmul.mubr.bf16.gmra.mrb[0].mxu0 %v1543
      %v2212 = vpop.f32.mrb[0].mxu0
      %v2213 = vadd.f32 0.0, %v2212
      %v2214 = vpop.f32.mrb[0].mxu0
      %v2215 = vpop.f32.mrb[0].mxu0
      %v2216 = vadd.f32 0.0, %v2215
      %v2217 = vpop.f32.mrb[0].mxu0
      %2218 = vmatprep.mubr.bf16.mxu0 0
      %2219 = vmatmul.mubr.bf16.gmra.mrb[0].mxu0 %v1546
      %v2220 = vpop.f32.mrb[0].mxu0
      %v2221 = vadd.f32 0.0, %v2220
      %v2222 = vpop.f32.mrb[0].mxu0
      %v2223 = vpop.f32.mrb[0].mxu0
      %v2224 = vadd.f32 0.0, %v2223
      %v2225 = vpop.f32.mrb[0].mxu0
      %2226 = vmatprep.mubr.bf16.mxu0 0
      %2227 = vmatmul.mubr.bf16.gmra.mrb[0].mxu0 %v1549
      %v2228 = vpop.f32.mrb[0].mxu0
      %v2229 = vadd.f32 0.0, %v2228
      %v2230 = vpop.f32.mrb[0].mxu0
      %v2231 = vpop.f32.mrb[0].mxu0
      %v2232 = vadd.f32 0.0, %v2231
      %v2233 = vpop.f32.mrb[0].mxu0
      %2234 = vmatprep.mubr.bf16.mxu0 0
      %2235 = vmatmul.mubr.bf16.gmra.mrb[0].mxu0 %v1552
      %v2236 = vpop.f32.mrb[0].mxu0
      %v2237 = vadd.f32 0.0, %v2236
      %v2238 = vpop.f32.mrb[0].mxu0
      %v2239 = vpop.f32.mrb[0].mxu0
      %v2240 = vadd.f32 0.0, %v2239
      %v2241 = vpop.f32.mrb[0].mxu0
      %2242 = vmatprep.mubr.bf16.mxu0 0
      %2243 = vmatmul.mubr.bf16.gmra.mrb[0].mxu0 %v1555
      %v2244 = vpop.f32.mrb[0].mxu0
      %v2245 = vadd.f32 0.0, %v2244
      %v2246 = vpop.f32.mrb[0].mxu0
      %v2247 = vpop.f32.mrb[0].mxu0
      %v2248 = vadd.f32 0.0, %v2247
      %v2249 = vpop.f32.mrb[0].mxu0
      %2250 = vmatprep.mubr.bf16.mxu0 0
      %2251 = vmatmul.mubr.bf16.gmra.mrb[0].mxu0 %v1802
      %v2252 = vpop.f32.mrb[0].mxu0
      %v2253 = vadd.f32 0.0, %v2252
      %v2254 = vpop.f32.mrb[0].mxu0
      %v2255 = vpop.f32.mrb[0].mxu0
      %v2256 = vadd.f32 0.0, %v2255
      %v2257 = vpop.f32.mrb[0].mxu0
      %2258 = vmatprep.mubr.bf16.mxu0 0
      %2259 = vmatmul.mubr.bf16.gmra.mrb[0].mxu0 %v2165
      %v2260 = vpop.f32.mrb[0].mxu0
      %v2261 = vadd.f32 0.0, %v2260
      %v2262 = vpop.f32.mrb[0].mxu0
      %v2263 = vpop.f32.mrb[0].mxu0
      %v2264 = vadd.f32 0.0, %v2263
      %v2265 = vpop.f32.mrb[0].mxu0
      %2266 = vdwg.mxu0
      %v2267 = vadd.f32 %v2146, %v2205
      %v2268 = vadd.f32 %v2147, %v2208
      %v2269 = vadd.f32 %v2148, %v2213
      %v2270 = vadd.f32 %v2149, %v2216
      %v2271 = vadd.f32 %v2150, %v2221
      %v2272 = vadd.f32 %v2151, %v2224
      %v2273 = vadd.f32 %v2152, %v2229
      %v2274 = vadd.f32 %v2153, %v2232
      %v2275 = vadd.f32 %v2154, %v2237
      %v2276 = vadd.f32 %v2155, %v2240
      %v2277 = vadd.f32 %v2156, %v2245
      %v2278 = vadd.f32 %v2157, %v2248
      %v2279 = vadd.f32 %v2158, %v2253
      %v2280 = vadd.f32 %v2159, %v2256
      %v2281 = vadd.f32 %v2160, %v2261
      %v2282 = vadd.f32 %v2161, %v2264
      %s2283 = scalar_lea.vmem %s5, 14
      %v2284 = vld [vmem:[%s2283] sm:$0x3]
      %v2286 = vsel %vm1407, %v1383, 0
      %v2289 = vsel %vm1432, %v2284, 0
      %2291 = vmatprep.subr.bf16.mxu0 0
      %2292 = vmatpush1.bf16.msra.mxu0 %v2289
      %2293 = vmatprep.subr.bf16.mxu0 0
      %2294 = vmatpush1.bf16.msra.mxu0 0
      %2295 = vmatprep.subr.bf16.mxu0 0
      %2296 = vmatpush1.bf16.msra.mxu0 0
      %2297 = vmatprep.subr.bf16.mxu0 0
      %2298 = vmatpush1.bf16.msra.mxu0 0
      %2299 = vmatprep.subr.bf16.mxu0 0
      %2300 = vmatpush1.bf16.msra.mxu0 0
      %2301 = vmatprep.subr.bf16.mxu0 0
      %2302 = vmatpush1.bf16.msra.mxu0 0
      %2303 = vmatprep.subr.bf16.mxu0 0
      %2304 = vmatpush1.bf16.msra.mxu0 0
      %2305 = vmatprep.subr.bf16.mxu0 0
      %2306 = vmatpush1.bf16.msra.mxu0 0
      %2307 = vmatprep.subr.bf16.mxu0 0
      %2308 = vmatpush1.bf16.msra.mxu0 0
      %2309 = vmatprep.subr.bf16.mxu0 0
      %2310 = vmatpush1.bf16.msra.mxu0 0
      %2311 = vmatprep.subr.bf16.mxu0 0
      %2312 = vmatpush1.bf16.msra.mxu0 0
      %2313 = vmatprep.subr.bf16.mxu0 0
      %2314 = vmatpush1.bf16.msra.mxu0 0
      %2315 = vmatprep.subr.bf16.mxu0 0
      %2316 = vmatpush1.bf16.msra.mxu0 0
      %2317 = vmatprep.subr.bf16.mxu0 0
      %2318 = vmatpush1.bf16.msra.mxu0 0
      %2319 = vmatprep.subr.bf16.mxu0 0
      %2320 = vmatpush1.bf16.msra.mxu0 0
      %2321 = vmatprep.subr.bf16.mxu0 0
      %2322 = vmatpush1.bf16.msra.mxu0 0
      %2323 = vmatprep.mubr.bf16.mxu0 0
      %2324 = vmatmul.mubr.bf16.gmra.mrb[0].mxu0 %v1415
      %v2325 = vpop.f32.mrb[0].mxu0
      %v2326 = vadd.f32 0.0, %v2325
      %v2327 = vpop.f32.mrb[0].mxu0
      %v2328 = vpop.f32.mrb[0].mxu0
      %v2329 = vadd.f32 0.0, %v2328
      %v2330 = vpop.f32.mrb[0].mxu0
      %2331 = vmatprep.mubr.bf16.mxu0 0
      %2332 = vmatmul.mubr.bf16.gmra.mrb[0].mxu0 %v1418
      %v2333 = vpop.f32.mrb[0].mxu0
      %v2334 = vadd.f32 0.0, %v2333
      %v2335 = vpop.f32.mrb[0].mxu0
      %v2336 = vpop.f32.mrb[0].mxu0
      %v2337 = vadd.f32 0.0, %v2336
      %v2338 = vpop.f32.mrb[0].mxu0
      %2339 = vmatprep.mubr.bf16.mxu0 0
      %2340 = vmatmul.mubr.bf16.gmra.mrb[0].mxu0 %v1421
      %v2341 = vpop.f32.mrb[0].mxu0
      %v2342 = vadd.f32 0.0, %v2341
      %v2343 = vpop.f32.mrb[0].mxu0
      %v2344 = vpop.f32.mrb[0].mxu0
      %v2345 = vadd.f32 0.0, %v2344
      %v2346 = vpop.f32.mrb[0].mxu0
      %2347 = vmatprep.mubr.bf16.mxu0 0
      %2348 = vmatmul.mubr.bf16.gmra.mrb[0].mxu0 %v1424
      %v2349 = vpop.f32.mrb[0].mxu0
      %v2350 = vadd.f32 0.0, %v2349
      %v2351 = vpop.f32.mrb[0].mxu0
      %v2352 = vpop.f32.mrb[0].mxu0
      %v2353 = vadd.f32 0.0, %v2352
      %v2354 = vpop.f32.mrb[0].mxu0
      %2355 = vmatprep.mubr.bf16.mxu0 0
      %2356 = vmatmul.mubr.bf16.gmra.mrb[0].mxu0 %v1427
      %v2357 = vpop.f32.mrb[0].mxu0
      %v2358 = vadd.f32 0.0, %v2357
      %v2359 = vpop.f32.mrb[0].mxu0
      %v2360 = vpop.f32.mrb[0].mxu0
      %v2361 = vadd.f32 0.0, %v2360
      %v2362 = vpop.f32.mrb[0].mxu0
      %2363 = vmatprep.mubr.bf16.mxu0 0
      %2364 = vmatmul.mubr.bf16.gmra.mrb[0].mxu0 %v1430
      %v2365 = vpop.f32.mrb[0].mxu0
      %v2366 = vadd.f32 0.0, %v2365
      %v2367 = vpop.f32.mrb[0].mxu0
      %v2368 = vpop.f32.mrb[0].mxu0
      %v2369 = vadd.f32 0.0, %v2368
      %v2370 = vpop.f32.mrb[0].mxu0
      %2371 = vmatprep.mubr.bf16.mxu0 0
      %2372 = vmatmul.mubr.bf16.gmra.mrb[0].mxu0 %v1923
      %v2373 = vpop.f32.mrb[0].mxu0
      %v2374 = vadd.f32 0.0, %v2373
      %v2375 = vpop.f32.mrb[0].mxu0
      %v2376 = vpop.f32.mrb[0].mxu0
      %v2377 = vadd.f32 0.0, %v2376
      %v2378 = vpop.f32.mrb[0].mxu0
      %2379 = vmatprep.mubr.bf16.mxu0 0
      %2380 = vmatmul.mubr.bf16.gmra.mrb[0].mxu0 %v2286
      %v2381 = vpop.f32.mrb[0].mxu0
      %v2382 = vadd.f32 0.0, %v2381
      %v2383 = vpop.f32.mrb[0].mxu0
      %v2384 = vpop.f32.mrb[0].mxu0
      %v2385 = vadd.f32 0.0, %v2384
      %v2386 = vpop.f32.mrb[0].mxu0
      %2387 = vdwg.mxu0
      %v2388 = vadd.f32 %v2267, %v2326
      %v2389 = vadd.f32 %v2268, %v2329
      %v2390 = vadd.f32 %v2269, %v2334
      %v2391 = vadd.f32 %v2270, %v2337
      %v2392 = vadd.f32 %v2271, %v2342
      %v2393 = vadd.f32 %v2272, %v2345
      %v2394 = vadd.f32 %v2273, %v2350
      %v2395 = vadd.f32 %v2274, %v2353
      %v2396 = vadd.f32 %v2275, %v2358
      %v2397 = vadd.f32 %v2276, %v2361
      %v2398 = vadd.f32 %v2277, %v2366
      %v2399 = vadd.f32 %v2278, %v2369
      %v2400 = vadd.f32 %v2279, %v2374
      %v2401 = vadd.f32 %v2280, %v2377
      %v2402 = vadd.f32 %v2281, %v2382
      %v2403 = vadd.f32 %v2282, %v2385
      %s2404 = scalar_lea.vmem %s5, 16
      %v2405 = vld [vmem:[%s2404] sm:$0x3]
      %v2407 = vsel %vm1407, %v1403, 0
      %v2410 = vsel %vm1432, %v2405, 0
      %2412 = vmatprep.subr.bf16.mxu0 0
      %2413 = vmatpush1.bf16.msra.mxu0 %v2410
      %2414 = vmatprep.subr.bf16.mxu0 0
      %2415 = vmatpush1.bf16.msra.mxu0 0
      %2416 = vmatprep.subr.bf16.mxu0 0
      %2417 = vmatpush1.bf16.msra.mxu0 0
      %2418 = vmatprep.subr.bf16.mxu0 0
      %2419 = vmatpush1.bf16.msra.mxu0 0
      %2420 = vmatprep.subr.bf16.mxu0 0
      %2421 = vmatpush1.bf16.msra.mxu0 0
      %2422 = vmatprep.subr.bf16.mxu0 0
      %2423 = vmatpush1.bf16.msra.mxu0 0
      %2424 = vmatprep.subr.bf16.mxu0 0
      %2425 = vmatpush1.bf16.msra.mxu0 0
      %2426 = vmatprep.subr.bf16.mxu0 0
      %2427 = vmatpush1.bf16.msra.mxu0 0
      %2428 = vmatprep.subr.bf16.mxu0 0
      %2429 = vmatpush1.bf16.msra.mxu0 0
      %2430 = vmatprep.subr.bf16.mxu0 0
      %2431 = vmatpush1.bf16.msra.mxu0 0
      %2432 = vmatprep.subr.bf16.mxu0 0
      %2433 = vmatpush1.bf16.msra.mxu0 0
      %2434 = vmatprep.subr.bf16.mxu0 0
      %2435 = vmatpush1.bf16.msra.mxu0 0
      %2436 = vmatprep.subr.bf16.mxu0 0
      %2437 = vmatpush1.bf16.msra.mxu0 0
      %2438 = vmatprep.subr.bf16.mxu0 0
      %2439 = vmatpush1.bf16.msra.mxu0 0
      %2440 = vmatprep.subr.bf16.mxu0 0
      %2441 = vmatpush1.bf16.msra.mxu0 0
      %2442 = vmatprep.subr.bf16.mxu0 0
      %2443 = vmatpush1.bf16.msra.mxu0 0
      %2444 = vmatprep.mubr.bf16.mxu0 0
      %2445 = vmatmul.mubr.bf16.gmra.mrb[0].mxu0 %v1666
      %v2446 = vpop.f32.mrb[0].mxu0
      %v2447 = vadd.f32 0.0, %v2446
      %v2448 = vpop.f32.mrb[0].mxu0
      %v2449 = vpop.f32.mrb[0].mxu0
      %v2450 = vadd.f32 0.0, %v2449
      %v2451 = vpop.f32.mrb[0].mxu0
      %2452 = vmatprep.mubr.bf16.mxu0 0
      %2453 = vmatmul.mubr.bf16.gmra.mrb[0].mxu0 %v1669
      %v2454 = vpop.f32.mrb[0].mxu0
      %v2455 = vadd.f32 0.0, %v2454
      %v2456 = vpop.f32.mrb[0].mxu0
      %v2457 = vpop.f32.mrb[0].mxu0
      %v2458 = vadd.f32 0.0, %v2457
      %v2459 = vpop.f32.mrb[0].mxu0
      %2460 = vmatprep.mubr.bf16.mxu0 0
      %2461 = vmatmul.mubr.bf16.gmra.mrb[0].mxu0 %v1672
      %v2462 = vpop.f32.mrb[0].mxu0
      %v2463 = vadd.f32 0.0, %v2462
      %v2464 = vpop.f32.mrb[0].mxu0
      %v2465 = vpop.f32.mrb[0].mxu0
      %v2466 = vadd.f32 0.0, %v2465
      %v2467 = vpop.f32.mrb[0].mxu0
      %2468 = vmatprep.mubr.bf16.mxu0 0
      %2469 = vmatmul.mubr.bf16.gmra.mrb[0].mxu0 %v1675
      %v2470 = vpop.f32.mrb[0].mxu0
      %v2471 = vadd.f32 0.0, %v2470
      %v2472 = vpop.f32.mrb[0].mxu0
      %v2473 = vpop.f32.mrb[0].mxu0
      %v2474 = vadd.f32 0.0, %v2473
      %v2475 = vpop.f32.mrb[0].mxu0
      %2476 = vmatprep.mubr.bf16.mxu0 0
      %2477 = vmatmul.mubr.bf16.gmra.mrb[0].mxu0 %v1678
      %v2478 = vpop.f32.mrb[0].mxu0
      %v2479 = vadd.f32 0.0, %v2478
      %v2480 = vpop.f32.mrb[0].mxu0
      %v2481 = vpop.f32.mrb[0].mxu0
      %v2482 = vadd.f32 0.0, %v2481
      %v2483 = vpop.f32.mrb[0].mxu0
      %2484 = vmatprep.mubr.bf16.mxu0 0
      %2485 = vmatmul.mubr.bf16.gmra.mrb[0].mxu0 %v1681
      %v2486 = vpop.f32.mrb[0].mxu0
      %v2487 = vadd.f32 0.0, %v2486
      %v2488 = vpop.f32.mrb[0].mxu0
      %v2489 = vpop.f32.mrb[0].mxu0
      %v2490 = vadd.f32 0.0, %v2489
      %v2491 = vpop.f32.mrb[0].mxu0
      %2492 = vmatprep.mubr.bf16.mxu0 0
      %2493 = vmatmul.mubr.bf16.gmra.mrb[0].mxu0 %v2044
      %v2494 = vpop.f32.mrb[0].mxu0
      %v2495 = vadd.f32 0.0, %v2494
      %v2496 = vpop.f32.mrb[0].mxu0
      %v2497 = vpop.f32.mrb[0].mxu0
      %v2498 = vadd.f32 0.0, %v2497
      %v2499 = vpop.f32.mrb[0].mxu0
      %2500 = vmatprep.mubr.bf16.mxu0 0
      %2501 = vmatmul.mubr.bf16.gmra.mrb[0].mxu0 %v2407
      %v2502 = vpop.f32.mrb[0].mxu0
      %v2503 = vadd.f32 0.0, %v2502
      %v2504 = vpop.f32.mrb[0].mxu0
      %v2505 = vpop.f32.mrb[0].mxu0
      %v2506 = vadd.f32 0.0, %v2505
      %v2507 = vpop.f32.mrb[0].mxu0
      %2508 = vdwg.mxu0
      %v2509 = vadd.f32 %v2388, %v2447
      %v2510 = vadd.f32 %v2389, %v2450
      %v2511 = vadd.f32 %v2390, %v2455
      %v2512 = vadd.f32 %v2391, %v2458
      %v2513 = vadd.f32 %v2392, %v2463
      %v2514 = vadd.f32 %v2393, %v2466
      %v2515 = vadd.f32 %v2394, %v2471
      %v2516 = vadd.f32 %v2395, %v2474
      %v2517 = vadd.f32 %v2396, %v2479
      %v2518 = vadd.f32 %v2397, %v2482
      %v2519 = vadd.f32 %v2398, %v2487
      %v2520 = vadd.f32 %v2399, %v2490
      %v2521 = vadd.f32 %v2400, %v2495
      %v2522 = vadd.f32 %v2401, %v2498
      %v2523 = vadd.f32 %v2402, %v2503
      %v2524 = vadd.f32 %v2403, %v2506
      %v2525 = vld [vmem:[%s6] sm:$0x1]
      %v2527 = vlaneseq
      %v2528 = vshrl.u32 %v2527, 7
      %v2529 = vsub.s32 0, %v2528
      %v2530 = vrot.slane %v2525, %v2529
      %v2532 = vadd.f32 %v2509, %v2530
      %v2533 = vadd.f32 %v2510, %v2530
      %v2534 = vadd.f32 %v2511, %v2530
      %v2535 = vadd.f32 %v2512, %v2530
      %v2536 = vadd.f32 %v2513, %v2530
      %v2537 = vadd.f32 %v2514, %v2530
      %v2538 = vadd.f32 %v2515, %v2530
      %v2539 = vadd.f32 %v2516, %v2530
      %v2540 = vadd.f32 %v2517, %v2530
      %v2541 = vadd.f32 %v2518, %v2530
      %v2542 = vadd.f32 %v2519, %v2530
      %v2543 = vadd.f32 %v2520, %v2530
      %v2544 = vadd.f32 %v2521, %v2530
      %v2545 = vadd.f32 %v2522, %v2530
      %v2546 = vadd.f32 %v2523, %v2530
      %v2547 = vadd.f32 %v2524, %v2530
      %vm2548 = vcmp.gt.f32.partialorder %v2532, 0.0
      %vm2549 = vcmp.gt.f32.partialorder %v2533, 0.0
      %vm2550 = vcmp.gt.f32.partialorder %v2534, 0.0
      %vm2551 = vcmp.gt.f32.partialorder %v2535, 0.0
      %vm2552 = vcmp.gt.f32.partialorder %v2536, 0.0
      %vm2553 = vcmp.gt.f32.partialorder %v2537, 0.0
      %vm2554 = vcmp.gt.f32.partialorder %v2538, 0.0
      %vm2555 = vcmp.gt.f32.partialorder %v2539, 0.0
      %vm2556 = vcmp.gt.f32.partialorder %v2540, 0.0
      %vm2557 = vcmp.gt.f32.partialorder %v2541, 0.0
      %vm2558 = vcmp.gt.f32.partialorder %v2542, 0.0
      %vm2559 = vcmp.gt.f32.partialorder %v2543, 0.0
      %vm2560 = vcmp.gt.f32.partialorder %v2544, 0.0
      %vm2561 = vcmp.gt.f32.partialorder %v2545, 0.0
      %vm2562 = vcmp.gt.f32.partialorder %v2546, 0.0
      %vm2563 = vcmp.gt.f32.partialorder %v2547, 0.0
      %v2564 = vmul.f32 %v2532, 0.1
      %v2565 = vmul.f32 %v2533, 0.1
      %v2566 = vmul.f32 %v2534, 0.1
      %v2567 = vmul.f32 %v2535, 0.1
      %v2568 = vmul.f32 %v2536, 0.1
      %v2569 = vmul.f32 %v2537, 0.1
      %v2570 = vmul.f32 %v2538, 0.1
      %v2571 = vmul.f32 %v2539, 0.1
      %v2572 = vmul.f32 %v2540, 0.1
      %v2573 = vmul.f32 %v2541, 0.1
      %v2574 = vmul.f32 %v2542, 0.1
      %v2575 = vmul.f32 %v2543, 0.1
      %v2576 = vmul.f32 %v2544, 0.1
      %v2577 = vmul.f32 %v2545, 0.1
      %v2578 = vmul.f32 %v2546, 0.1
      %v2579 = vmul.f32 %v2547, 0.1
      %v2580 = vsel %vm2548, %v2532, %v2564
      %v2581 = vsel %vm2549, %v2533, %v2565
      %v2582 = vsel %vm2550, %v2534, %v2566
      %v2583 = vsel %vm2551, %v2535, %v2567
      %v2584 = vsel %vm2552, %v2536, %v2568
      %v2585 = vsel %vm2553, %v2537, %v2569
      %v2586 = vsel %vm2554, %v2538, %v2570
      %v2587 = vsel %vm2555, %v2539, %v2571
      %v2588 = vsel %vm2556, %v2540, %v2572
      %v2589 = vsel %vm2557, %v2541, %v2573
      %v2590 = vsel %vm2558, %v2542, %v2574
      %v2591 = vsel %vm2559, %v2543, %v2575
      %v2592 = vsel %vm2560, %v2544, %v2576
      %v2593 = vsel %vm2561, %v2545, %v2577
      %v2594 = vsel %vm2562, %v2546, %v2578
      %v2595 = vsel %vm2563, %v2547, %v2579
      %v2596 = vunpack.c.l.bf16 %v448
      %v2597 = vunpack.c.l.bf16 %v449
      %v2598 = vunpack.c.l.bf16 %v450
      %v2599 = vunpack.c.l.bf16 %v451
      %v2600 = vunpack.c.l.bf16 %v452
      %v2601 = vunpack.c.l.bf16 %v453
      %v2602 = vunpack.c.l.bf16 %v454
      %v2603 = vunpack.c.l.bf16 %v455
      %v2604 = vunpack.c.l.bf16 %v456
      %v2605 = vunpack.c.l.bf16 %v457
      %v2606 = vunpack.c.l.bf16 %v458
      %v2607 = vunpack.c.l.bf16 %v459
      %v2608 = vunpack.c.l.bf16 %v460
      %v2609 = vunpack.c.l.bf16 %v461
      %v2610 = vunpack.c.l.bf16 %v462
      %v2611 = vunpack.c.l.bf16 %v463
      %v2612 = vadd.f32 %v2580, %v2596
      %v2613 = vadd.f32 %v2581, %v2597
      %v2614 = vadd.f32 %v2582, %v2598
      %v2615 = vadd.f32 %v2583, %v2599
      %v2616 = vadd.f32 %v2584, %v2600
      %v2617 = vadd.f32 %v2585, %v2601
      %v2618 = vadd.f32 %v2586, %v2602
      %v2619 = vadd.f32 %v2587, %v2603
      %v2620 = vadd.f32 %v2588, %v2604
      %v2621 = vadd.f32 %v2589, %v2605
      %v2622 = vadd.f32 %v2590, %v2606
      %v2623 = vadd.f32 %v2591, %v2607
      %v2624 = vadd.f32 %v2592, %v2608
      %v2625 = vadd.f32 %v2593, %v2609
      %v2626 = vadd.f32 %v2594, %v2610
      %v2627 = vadd.f32 %v2595, %v2611
      %v2628 = vpack.c.bf16 %v2613, %v2612
      %v2629 = vpack.c.bf16 %v2615, %v2614
      %v2630 = vpack.c.bf16 %v2617, %v2616
      %v2631 = vpack.c.bf16 %v2619, %v2618
      %v2632 = vpack.c.bf16 %v2621, %v2620
      %v2633 = vpack.c.bf16 %v2623, %v2622
      %v2634 = vpack.c.bf16 %v2625, %v2624
      %v2635 = vpack.c.bf16 %v2627, %v2626
      %v2644 = vunpack.c.l.b16 %v2628
      %v2645 = vunpack.c.h.b16 %v2628
      %v2646 = vunpack.c.l.b16 %v2629
      %v2647 = vunpack.c.h.b16 %v2629
      %v2648 = vunpack.c.l.b16 %v2630
      %v2649 = vunpack.c.h.b16 %v2630
      %v2650 = vunpack.c.l.b16 %v2631
      %v2651 = vunpack.c.h.b16 %v2631
      %v2652 = vunpack.c.l.b16 %v2632
      %v2653 = vunpack.c.h.b16 %v2632
      %v2654 = vunpack.c.l.b16 %v2633
      %v2655 = vunpack.c.h.b16 %v2633
      %v2656 = vunpack.c.l.b16 %v2634
      %v2657 = vunpack.c.h.b16 %v2634
      %v2658 = vunpack.c.l.b16 %v2635
      %v2659 = vunpack.c.h.b16 %v2635
      %v2660 = vpack.c.b16 %v2644, %v2644
      %v2661 = vpack.c.b16 %v2645, %v2645
      %v2662 = vpack.c.b16 %v2646, %v2646
      %v2663 = vpack.c.b16 %v2647, %v2647
      %v2664 = vpack.c.b16 %v2648, %v2648
      %v2665 = vpack.c.b16 %v2649, %v2649
      %v2666 = vpack.c.b16 %v2650, %v2650
      %v2667 = vpack.c.b16 %v2651, %v2651
      %v2668 = vpack.c.b16 %v2652, %v2652
      %v2669 = vpack.c.b16 %v2653, %v2653
      %v2670 = vpack.c.b16 %v2654, %v2654
      %v2671 = vpack.c.b16 %v2655, %v2655
      %v2672 = vpack.c.b16 %v2656, %v2656
      %v2673 = vpack.c.b16 %v2657, %v2657
      %v2674 = vpack.c.b16 %v2658, %v2658
      %v2675 = vpack.c.b16 %v2659, %v2659
      %vm2692 = vcmask 60416
      %2693 = vst.msk [vmem:[%s444] sm:$0xf] %vm2692, %v2660
      %2694 = vst.msk [vmem:[%s444 + $0x4] sm:$0xf] %vm2692, %v2661
      %2695 = vst.msk [vmem:[%s444 + $0x8] sm:$0xf] %vm2692, %v2662
      %2696 = vst.msk [vmem:[%s444 + $0xc] sm:$0xf] %vm2692, %v2663
      %2697 = vst.msk [vmem:[%s444 + $0x10] sm:$0xf] %vm2692, %v2664
      %2698 = vst.msk [vmem:[%s444 + $0x14] sm:$0xf] %vm2692, %v2665
      %2699 = vst.msk [vmem:[%s444 + $0x18] sm:$0xf] %vm2692, %v2666
      %2700 = vst.msk [vmem:[%s444 + $0x1c] sm:$0xf] %vm2692, %v2667
      %2701 = vst.msk [vmem:[%s444 + $0x20] sm:$0xf] %vm2692, %v2668
      %2702 = vst.msk [vmem:[%s444 + $0x24] sm:$0xf] %vm2692, %v2669
      %2703 = vst.msk [vmem:[%s444 + $0x28] sm:$0xf] %vm2692, %v2670
      %2704 = vst.msk [vmem:[%s444 + $0x2c] sm:$0xf] %vm2692, %v2671
      %2705 = vst.msk [vmem:[%s444 + $0x30] sm:$0xf] %vm2692, %v2672
      %2706 = vst.msk [vmem:[%s444 + $0x34] sm:$0xf] %vm2692, %v2673
      %2707 = vst.msk [vmem:[%s444 + $0x38] sm:$0xf] %vm2692, %v2674
      %2708 = vst.msk [vmem:[%s444 + $0x3c] sm:$0xf] %vm2692, %v2675
      %s2709 = smul.u32 16, %s23
      %p2710 = scmp.lt.s32.totalorder %s22, 1
      %s2711 = scalar_select %p2710, %s22, 1
      %p2712 = scmp.lt.s32.totalorder %s2709, 31
      %s2713 = scalar_select %p2712, %s2709, 31
      %s2714 = smul.addr %s2711, 32
      %s2715 = sadd.s32 %s2713, %s2714
      %s2716 = smul.addr %s2715, 4
      %s2717 = scalar_lea.vmem %s7, %s2716
      // Predicated region
      $region49: #{tpu_custom_call.1} parent=47 // pred_check
        %p2718 = pneg %p234
      $region50: #{tpu_custom_call.1} parent=47 // pred_check_branch
        %2720 = sbr.rel (%p2718) target = $region52
      $region51: #{tpu_custom_call.1} parent=47 // pred_region
        %s2721 = smul.u32 16, %s23
      $region52: #{tpu_custom_call.1} parent=47 // pred_fallthru
        _
    $region48: #{tpu_custom_call.1} parent=5 // pred_fallthru
      _
    %p2722 = scmp.le.s32.totalorder 2, %s13
    // Predicated region
    $region53: #{tpu_custom_call.1} parent=5 // pred_check
      %p2723 = pneg %p2722
    $region54: #{tpu_custom_call.1} parent=5 // pred_check_branch
      %2725 = sbr.rel (%p2723) target = $region56
    $region55: #{tpu_custom_call.1} parent=5 // pred_region
      %s2726 = ssub.s32 %s13, 2
      // Predicated region
      $region57: #{tpu_custom_call.1} parent=55 // pred_check
        %p2727 = pneg %p240
      $region58: #{tpu_custom_call.1} parent=55 // pred_check_branch
        %2729 = sbr.rel (%p2727) target = $region60
      $region59: #{tpu_custom_call.1} parent=55 // pred_region
        %s2730 = smul.u32 16, %s25
        %p2731 = scmp.lt.s32.totalorder %s24, 1
        %s2732 = scalar_select %p2731, %s24, 1
        %p2733 = scmp.lt.s32.totalorder %s2730, 31
        %s2734 = scalar_select %p2733, %s2730, 31
        %s2735 = smul.addr %s2732, 32
        %s2736 = sadd.s32 %s2734, %s2735
        %s2737 = smul.addr %s2736, 4
        %s2738 = scalar_lea.vmem %s7, %s2737
      $region60: #{tpu_custom_call.1} parent=55 // pred_fallthru
        _
    $region56: #{tpu_custom_call.1} parent=5 // pred_fallthru
      _
  $region6: #{tpu_custom_call.1} parent=0 // loop_footer
    %s17 = sadd.s32 1, %s13
  $region7: #{tpu_custom_call.1} parent=0 // loop_footer_branch
    %12 = sbr.rel target = $region3
  $region8: #{tpu_custom_call.1} parent=0 // loop_exit
    _

</llo_original>
